<compile_context>
chip_gen: v7x
topology: tpu7x:2x2x1
jax: 0.10.0
libtpu: 0.0.40
codegen_flags: <defaults>
</compile_context>

<pallas_src>
import functools

import jax
import jax.numpy as jnp
from jax.experimental import pallas as pl
from jax.experimental.pallas import tpu as pltpu


def _round_up(x, m):
    return (x + m - 1) // m * m


# ---------------------------------------------------------------------------
# Pallas kernel 1: conv-as-matmul with fused BatchNorm statistics.
#   a [M, K] (bf16 patches) @ w [K, C] (bf16) -> y [M, C] (f32)
#   plus per-channel sum(y) and sum(y*y) accumulated across the M-tile grid.
# ---------------------------------------------------------------------------
def _conv_stats_kernel(a_ref, w_ref, y_ref, sum_ref, sq_ref):
    @pl.when(pl.program_id(0) == 0)
    def _():
        sum_ref[...] = jnp.zeros_like(sum_ref)
        sq_ref[...] = jnp.zeros_like(sq_ref)

    y = jnp.dot(a_ref[...], w_ref[...], preferred_element_type=jnp.float32)
    y_ref[...] = y
    sum_ref[...] += jnp.sum(y, axis=0, keepdims=True)
    sq_ref[...] += jnp.sum(y * y, axis=0, keepdims=True)


@functools.lru_cache(maxsize=None)
def _build_conv_stats(M, K, C, tm):
    return pl.pallas_call(
        _conv_stats_kernel,
        out_shape=(jax.ShapeDtypeStruct((M, C), jnp.float32),
                   jax.ShapeDtypeStruct((1, C), jnp.float32),
                   jax.ShapeDtypeStruct((1, C), jnp.float32)),
        grid_spec=pltpu.PrefetchScalarGridSpec(
            num_scalar_prefetch=0,
            grid=(M // tm,),
            in_specs=[pl.BlockSpec((tm, K), lambda i: (i, 0)),   # patches tile
                      pl.BlockSpec((K, C), lambda i: (0, 0))],   # whole weight, stays resident
            out_specs=[pl.BlockSpec((tm, C), lambda i: (i, 0)),  # conv output tile
                       pl.BlockSpec((1, C), lambda i: (0, 0)),   # running sum   (revisited)
                       pl.BlockSpec((1, C), lambda i: (0, 0))],  # running sumsq (revisited)
        ),
        # The stats outputs are revisited across the M axis -> must be "arbitrary".
        compiler_params=pltpu.CompilerParams(dimension_semantics=("arbitrary",)),
    )


def conv_matmul_with_stats(a_bf16, w_bf16):
    """bf16 [M,K] @ bf16 [K,C] -> (f32 y [M,C], f32 sum [1,C], f32 sumsq [1,C])."""
    m, k = a_bf16.shape
    c = w_bf16.shape[1]
    tm = min(256, _round_up(m, 8))
    mp = _round_up(m, tm)
    if mp != m:  # padded zero rows contribute nothing to sum / sumsq
        a_bf16 = jnp.pad(a_bf16, ((0, mp - m), (0, 0)))
    y, s, sq = _build_conv_stats(mp, k, c, tm)(a_bf16, w_bf16)
    return y[:m], s, sq


# ---------------------------------------------------------------------------
# Pallas kernel 2: fused per-channel affine (BN) + LeakyReLU on a lane-dense slab.
# ---------------------------------------------------------------------------
def _bn_lrelu_kernel(x_ref, scale_ref, shift_ref, o_ref, *, slope):
    y = x_ref[...] * scale_ref[...] + shift_ref[...]
    o_ref[...] = jnp.where(y >= 0.0, y, slope * y)


@functools.lru_cache(maxsize=None)
def _build_bn_lrelu(R, L, tr, slope):
    return pl.pallas_call(
        functools.partial(_bn_lrelu_kernel, slope=slope),
        out_shape=jax.ShapeDtypeStruct((R, L), jnp.float32),
        grid_spec=pltpu.PrefetchScalarGridSpec(
            num_scalar_prefetch=0,
            grid=(R // tr,),
            in_specs=[pl.BlockSpec((tr, L), lambda i: (i, 0)),
                      pl.BlockSpec((1, L), lambda i: (0, 0)),
                      pl.BlockSpec((1, L), lambda i: (0, 0))],
            out_specs=pl.BlockSpec((tr, L), lambda i: (i, 0)),
        ),
        # Row blocks are independent -> "parallel" (sharded across TCs on v7x).
        compiler_params=pltpu.CompilerParams(dimension_semantics=("parallel",)),
    )


def bn_lrelu_lane_dense(x, scale_row, shift_row, *, slope=0.2):
    """x [R, L], scale/shift [1, L] -> leaky_relu(x * scale + shift)."""
    r, l = x.shape
    tr = min(1024, _round_up(r, 8))
    rp = _round_up(r, tr)
    if rp != r:
        x = jnp.pad(x, ((0, rp - r), (0, 0)))
    out = _build_bn_lrelu(rp, l, tr, float(slope))(x, scale_row, shift_row)
    return out[:r]


# ---------------------------------------------------------------------------
# Plain-JAX glue: im2col (kernel=3, padding=1), weight re-layout.
# ---------------------------------------------------------------------------
def im2col(x, stride):
    """x: [N,H,W,C] -> (patches [N*Ho*Wo, 9*C] in bf16, Ho, Wo). K order = (dy, dx, c)."""
    n, h, w, c = x.shape
    xp = jnp.pad(x, ((0, 0), (1, 1), (1, 1), (0, 0)))
    ho = (h + 2 - 3) // stride + 1
    wo = (w + 2 - 3) // stride + 1
    cols = []
    for dy in range(3):
        for dx in range(3):
            cols.append(xp[:, dy:dy + stride * ho:stride,
                           dx:dx + stride * wo:stride, :])
    patches = jnp.concatenate(cols, axis=-1).astype(jnp.bfloat16)
    return patches.reshape(n * ho * wo, 9 * c), ho, wo


def conv_w_to_mat(w):
    """PyTorch Conv2d weight [Cout,Cin,3,3] -> bf16 matmul RHS [9*Cin, Cout]."""
    cout, cin, kh, kw = w.shape
    return (jnp.transpose(w, (2, 3, 1, 0))
            .reshape(kh * kw * cin, cout)
            .astype(jnp.bfloat16))


# ---------------------------------------------------------------------------
# One Conv -> BatchNorm (training-mode batch stats) -> LeakyReLU(0.2) layer, NHWC.
# ---------------------------------------------------------------------------
def conv_bn_lrelu(x, w_mat, gamma, beta, *, stride, eps=1e-5, slope=0.2):
    n = x.shape[0]
    cout = w_mat.shape[1]
    patches, ho, wo = im2col(x, stride)
    y, s, sq = conv_matmul_with_stats(patches, w_mat)     # fused conv + stats (Pallas)

    m = float(y.shape[0])
    mean = s / m                                          # [1, C]
    var = jnp.maximum(sq / m - mean * mean, 0.0)          # biased variance (BN train mode)
    scale = gamma[None, :] * jax.lax.rsqrt(var + eps)     # [1, C]
    shift = beta[None, :] - mean * scale                  # [1, C]

    # Lane-dense slab: fold Wo (and pairs of rows while lanes < 128) into the lane dim.
    rows, lanes = n * ho, wo * cout
    while lanes < 128 and rows % 2 == 0:
        rows //= 2
        lanes *= 2
    y2 = y.reshape(rows, lanes)
    reps = lanes // cout
    z = bn_lrelu_lane_dense(y2, jnp.tile(scale, (1, reps)),
                            jnp.tile(shift, (1, reps)), slope=slope)
    return z.reshape(n, ho, wo, cout)


# ---------------------------------------------------------------------------
# Parameters (DCGAN-style weights_init: conv ~ N(0, 0.02), BN gamma ~ N(1, 0.02), beta = 0).
# ---------------------------------------------------------------------------
def make_down_params(key, cin, cout):
    ks = jax.random.split(key, 6)

    def conv_w(k, co, ci):
        return 0.02 * jax.random.normal(k, (co, ci, 3, 3), jnp.float32)

    def bn(k, c):
        return (1.0 + 0.02 * jax.random.normal(k, (c,), jnp.float32),
                jnp.zeros((c,), jnp.float32))

    p = {}
    p['w1'] = conv_w_to_mat(conv_w(ks[0], cin, cin));  p['g1'], p['b1'] = bn(ks[1], cin)
    p['w2'] = conv_w_to_mat(conv_w(ks[2], cin, cin));  p['g2'], p['b2'] = bn(ks[3], cin)
    p['w3'] = conv_w_to_mat(conv_w(ks[4], cout, cin)); p['g3'], p['b3'] = bn(ks[5], cout)
    return p


# ---------------------------------------------------------------------------
# Down.forward  (NCHW in -> NCHW out, spatial halved, channels _in -> _out)
# ---------------------------------------------------------------------------
@jax.jit
def down_forward(x_nchw, p):
    x = jnp.transpose(x_nchw, (0, 2, 3, 1)).astype(jnp.float32)     # NHWC
    x = conv_bn_lrelu(x, p['w1'], p['g1'], p['b1'], stride=1)
    x = conv_bn_lrelu(x, p['w2'], p['g2'], p['b2'], stride=1)
    x = conv_bn_lrelu(x, p['w3'], p['g3'], p['b3'], stride=2)
    return jnp.transpose(x, (0, 3, 1, 2))                           # NCHW


if __name__ == "__main__":
    key = jax.random.PRNGKey(0)
    pkey, xkey = jax.random.split(key)
    N, CIN, COUT, H, W = 2, 4, 8, 16, 16
    params = make_down_params(pkey, CIN, COUT)
    x = jax.random.normal(xkey, (N, CIN, H, W), dtype=jnp.float32)
    out = down_forward(x, params)
    jax.block_until_ready(out)
    assert out.shape == (N, COUT, H // 2, W // 2), out.shape
    assert bool(jnp.all(jnp.isfinite(out)))
    print("KERNEL_OK")
</pallas_src>

<mosaic_0001>
module attributes {stable_mosaic.version = 11 : i64} {
  func.func @_conv_stats_kernel(%arg0: i32, %arg1: memref<256x36xbf16, #tpu.memory_space<vmem>>, %arg2: memref<36x4xbf16, #tpu.memory_space<vmem>>, %arg3: memref<256x4xf32, #tpu.memory_space<vmem>>, %arg4: memref<1x4xf32, #tpu.memory_space<vmem>>, %arg5: memref<1x4xf32, #tpu.memory_space<vmem>>) attributes {dimension_semantics = [#tpu.dimension_semantics<arbitrary>], iteration_bounds = array<i64: 2>, scalar_prefetch = 0 : i64, scratch_operands = 0 : i64, tpu.core_type = #tpu.core_type<tc>, window_params = [{transform_indices = @transform_0, window_bounds = array<i64: 256, 36>}, {pipeline_mode = #tpu.pipeline_mode<synchronous>, transform_indices = @transform_1, window_bounds = array<i64: 36, 4>}, {transform_indices = @transform_2, window_bounds = array<i64: 256, 4>}, {pipeline_mode = #tpu.pipeline_mode<synchronous>, transform_indices = @transform_3, window_bounds = array<i64: 1, 4>}, {pipeline_mode = #tpu.pipeline_mode<synchronous>, transform_indices = @transform_4, window_bounds = array<i64: 1, 4>}]} {
    %c0_i32 = arith.constant 0 : i32
    %0 = arith.cmpi eq, %arg0, %c0_i32 : i32
    %1 = arith.extui %0 : i1 to i32
    %c0_i32_0 = arith.constant 0 : i32
    %2 = arith.cmpi ne, %1, %c0_i32_0 : i32
    scf.if %2 {
      %cst_16 = arith.constant 0.000000e+00 : f32
      %18 = vector.broadcast %cst_16 : f32 to vector<1x4xf32>
      %c0_17 = arith.constant 0 : index
      %c0_18 = arith.constant 0 : index
      %19 = vector.load %arg4[%c0_17, %c0_18] : memref<1x4xf32, #tpu.memory_space<vmem>>, vector<1x4xf32>
      tpu.vector_store %arg4[%c0_17, %c0_18], %18 {strides = array<i32>} : memref<1x4xf32, #tpu.memory_space<vmem>>, vector<1x4xf32>,
      %cst_19 = arith.constant 0.000000e+00 : f32
      %20 = vector.broadcast %cst_19 : f32 to vector<1x4xf32>
      %c0_20 = arith.constant 0 : index
      %c0_21 = arith.constant 0 : index
      %21 = vector.load %arg5[%c0_20, %c0_21] : memref<1x4xf32, #tpu.memory_space<vmem>>, vector<1x4xf32>
      tpu.vector_store %arg5[%c0_20, %c0_21], %20 {strides = array<i32>} : memref<1x4xf32, #tpu.memory_space<vmem>>, vector<1x4xf32>,
    } else {
    }
    %c0 = arith.constant 0 : index
    %c0_1 = arith.constant 0 : index
    %3 = vector.load %arg1[%c0, %c0_1] : memref<256x36xbf16, #tpu.memory_space<vmem>>, vector<256x36xbf16>
    %c0_2 = arith.constant 0 : index
    %c0_3 = arith.constant 0 : index
    %4 = vector.load %arg2[%c0_2, %c0_3] : memref<36x4xbf16, #tpu.memory_space<vmem>>, vector<36x4xbf16>
    %cst = arith.constant dense<0.000000e+00> : vector<256x4xf32>
    %5 = tpu.matmul %3, %4, %cst {dimension_numbers = #tpu.dot_dimension_numbers<[1], [0], [0], [1], [0, 0, 1, 1], [], []>} : vector<256x36xbf16>, vector<36x4xbf16>, vector<256x4xf32> -> vector<256x4xf32>
    %c0_4 = arith.constant 0 : index
    %c0_5 = arith.constant 0 : index
    %6 = vector.load %arg3[%c0_4, %c0_5] : memref<256x4xf32, #tpu.memory_space<vmem>>, vector<256x4xf32>
    tpu.vector_store %arg3[%c0_4, %c0_5], %5 {strides = array<i32>} : memref<256x4xf32, #tpu.memory_space<vmem>>, vector<256x4xf32>,
    %c0_6 = arith.constant 0 : index
    %c0_7 = arith.constant 0 : index
    %7 = vector.load %arg4[%c0_6, %c0_7] : memref<1x4xf32, #tpu.memory_space<vmem>>, vector<1x4xf32>
    %cst_8 = arith.constant dense<0.000000e+00> : vector<4xf32>
    %8 = vector.multi_reduction <add>, %5, %cst_8 [0] : vector<256x4xf32> to vector<4xf32>
    %9 = vector.shape_cast %8 : vector<4xf32> to vector<1x4xf32>
    %10 = arith.addf %7, %9 : vector<1x4xf32>
    %c0_9 = arith.constant 0 : index
    %c0_10 = arith.constant 0 : index
    %11 = vector.load %arg4[%c0_9, %c0_10] : memref<1x4xf32, #tpu.memory_space<vmem>>, vector<1x4xf32>
    tpu.vector_store %arg4[%c0_9, %c0_10], %10 {strides = array<i32>} : memref<1x4xf32, #tpu.memory_space<vmem>>, vector<1x4xf32>,
    %c0_11 = arith.constant 0 : index
    %c0_12 = arith.constant 0 : index
    %12 = vector.load %arg5[%c0_11, %c0_12] : memref<1x4xf32, #tpu.memory_space<vmem>>, vector<1x4xf32>
    %13 = arith.mulf %5, %5 : vector<256x4xf32>
    %cst_13 = arith.constant dense<0.000000e+00> : vector<4xf32>
    %14 = vector.multi_reduction <add>, %13, %cst_13 [0] : vector<256x4xf32> to vector<4xf32>
    %15 = vector.shape_cast %14 : vector<4xf32> to vector<1x4xf32>
    %16 = arith.addf %12, %15 : vector<1x4xf32>
    %c0_14 = arith.constant 0 : index
    %c0_15 = arith.constant 0 : index
    %17 = vector.load %arg5[%c0_14, %c0_15] : memref<1x4xf32, #tpu.memory_space<vmem>>, vector<1x4xf32>
    tpu.vector_store %arg5[%c0_14, %c0_15], %16 {strides = array<i32>} : memref<1x4xf32, #tpu.memory_space<vmem>>, vector<1x4xf32>,
    return
  }
  func.func @transform_0(%arg0: i32) -> (i32, i32) {
    %c0_i32 = arith.constant 0 : i32
    %c0_i32_0 = arith.constant 0 : i32
    return %arg0, %c0_i32 : i32, i32
  }
  func.func @transform_1(%arg0: i32) -> (i32, i32) {
    %c0_i32 = arith.constant 0 : i32
    %c0_i32_0 = arith.constant 0 : i32
    %c0_i32_1 = arith.constant 0 : i32
    return %c0_i32, %c0_i32_0 : i32, i32
  }
  func.func @transform_2(%arg0: i32) -> (i32, i32) {
    %c0_i32 = arith.constant 0 : i32
    %c0_i32_0 = arith.constant 0 : i32
    return %arg0, %c0_i32 : i32, i32
  }
  func.func @transform_3(%arg0: i32) -> (i32, i32) {
    %c0_i32 = arith.constant 0 : i32
    %c0_i32_0 = arith.constant 0 : i32
    %c0_i32_1 = arith.constant 0 : i32
    return %c0_i32, %c0_i32_0 : i32, i32
  }
  func.func @transform_4(%arg0: i32) -> (i32, i32) {
    %c0_i32 = arith.constant 0 : i32
    %c0_i32_0 = arith.constant 0 : i32
    %c0_i32_1 = arith.constant 0 : i32
    return %c0_i32, %c0_i32_0 : i32, i32
  }
}

module attributes {stable_mosaic.version = 11 : i64} {
  func.func @_bn_lrelu_kernel(%arg0: i32, %arg1: memref<16x128xf32, #tpu.memory_space<vmem>>, %arg2: memref<1x128xf32, #tpu.memory_space<vmem>>, %arg3: memref<1x128xf32, #tpu.memory_space<vmem>>, %arg4: memref<16x128xf32, #tpu.memory_space<vmem>>) attributes {dimension_semantics = [#tpu.dimension_semantics<parallel>], iteration_bounds = array<i64: 1>, scalar_prefetch = 0 : i64, scratch_operands = 0 : i64, tpu.core_type = #tpu.core_type<tc>, window_params = [{transform_indices = @transform_0, window_bounds = array<i64: 16, 128>}, {pipeline_mode = #tpu.pipeline_mode<synchronous>, transform_indices = @transform_1, window_bounds = array<i64: 1, 128>}, {pipeline_mode = #tpu.pipeline_mode<synchronous>, transform_indices = @transform_2, window_bounds = array<i64: 1, 128>}, {transform_indices = @transform_3, window_bounds = array<i64: 16, 128>}]} {
    %c0 = arith.constant 0 : index
    %c0_0 = arith.constant 0 : index
    %0 = vector.load %arg1[%c0, %c0_0] : memref<16x128xf32, #tpu.memory_space<vmem>>, vector<16x128xf32>
    %c0_1 = arith.constant 0 : index
    %c0_2 = arith.constant 0 : index
    %1 = vector.load %arg2[%c0_1, %c0_2] : memref<1x128xf32, #tpu.memory_space<vmem>>, vector<1x128xf32>
    %2 = vector.broadcast %1 : vector<1x128xf32> to vector<16x128xf32>
    %3 = arith.mulf %0, %2 : vector<16x128xf32>
    %c0_3 = arith.constant 0 : index
    %c0_4 = arith.constant 0 : index
    %4 = vector.load %arg3[%c0_3, %c0_4] : memref<1x128xf32, #tpu.memory_space<vmem>>, vector<1x128xf32>
    %5 = vector.broadcast %4 : vector<1x128xf32> to vector<16x128xf32>
    %6 = arith.addf %3, %5 : vector<16x128xf32>
    %cst = arith.constant 0.000000e+00 : f32
    %7 = vector.broadcast %cst : f32 to vector<16x128xf32>
    %8 = arith.cmpf oge, %6, %7 : vector<16x128xf32>
    %cst_5 = arith.constant 2.000000e-01 : f32
    %9 = vector.broadcast %cst_5 : f32 to vector<16x128xf32>
    %10 = arith.mulf %9, %6 : vector<16x128xf32>
    %11 = arith.select %8, %6, %10 : vector<16x128xi1>, vector<16x128xf32>
    %c0_6 = arith.constant 0 : index
    %c0_7 = arith.constant 0 : index
    %12 = vector.load %arg4[%c0_6, %c0_7] : memref<16x128xf32, #tpu.memory_space<vmem>>, vector<16x128xf32>
    tpu.vector_store %arg4[%c0_6, %c0_7], %11 {strides = array<i32>} : memref<16x128xf32, #tpu.memory_space<vmem>>, vector<16x128xf32>,
    return
  }
  func.func @transform_0(%arg0: i32) -> (i32, i32) {
    %c0_i32 = arith.constant 0 : i32
    %c0_i32_0 = arith.constant 0 : i32
    return %arg0, %c0_i32 : i32, i32
  }
  func.func @transform_1(%arg0: i32) -> (i32, i32) {
    %c0_i32 = arith.constant 0 : i32
    %c0_i32_0 = arith.constant 0 : i32
    %c0_i32_1 = arith.constant 0 : i32
    return %c0_i32, %c0_i32_0 : i32, i32
  }
  func.func @transform_2(%arg0: i32) -> (i32, i32) {
    %c0_i32 = arith.constant 0 : i32
    %c0_i32_0 = arith.constant 0 : i32
    %c0_i32_1 = arith.constant 0 : i32
    return %c0_i32, %c0_i32_0 : i32, i32
  }
  func.func @transform_3(%arg0: i32) -> (i32, i32) {
    %c0_i32 = arith.constant 0 : i32
    %c0_i32_0 = arith.constant 0 : i32
    return %arg0, %c0_i32 : i32, i32
  }
}

module attributes {stable_mosaic.version = 11 : i64} {
  func.func @_conv_stats_kernel(%arg0: i32, %arg1: memref<128x36xbf16, #tpu.memory_space<vmem>>, %arg2: memref<36x8xbf16, #tpu.memory_space<vmem>>, %arg3: memref<128x8xf32, #tpu.memory_space<vmem>>, %arg4: memref<1x8xf32, #tpu.memory_space<vmem>>, %arg5: memref<1x8xf32, #tpu.memory_space<vmem>>) attributes {dimension_semantics = [#tpu.dimension_semantics<arbitrary>], iteration_bounds = array<i64: 1>, scalar_prefetch = 0 : i64, scratch_operands = 0 : i64, tpu.core_type = #tpu.core_type<tc>, window_params = [{transform_indices = @transform_0, window_bounds = array<i64: 128, 36>}, {pipeline_mode = #tpu.pipeline_mode<synchronous>, transform_indices = @transform_1, window_bounds = array<i64: 36, 8>}, {transform_indices = @transform_2, window_bounds = array<i64: 128, 8>}, {pipeline_mode = #tpu.pipeline_mode<synchronous>, transform_indices = @transform_3, window_bounds = array<i64: 1, 8>}, {pipeline_mode = #tpu.pipeline_mode<synchronous>, transform_indices = @transform_4, window_bounds = array<i64: 1, 8>}]} {
    %c0_i32 = arith.constant 0 : i32
    %0 = arith.cmpi eq, %arg0, %c0_i32 : i32
    %1 = arith.extui %0 : i1 to i32
    %c0_i32_0 = arith.constant 0 : i32
    %2 = arith.cmpi ne, %1, %c0_i32_0 : i32
    scf.if %2 {
      %cst_16 = arith.constant 0.000000e+00 : f32
      %18 = vector.broadcast %cst_16 : f32 to vector<1x8xf32>
      %c0_17 = arith.constant 0 : index
      %c0_18 = arith.constant 0 : index
      %19 = vector.load %arg4[%c0_17, %c0_18] : memref<1x8xf32, #tpu.memory_space<vmem>>, vector<1x8xf32>
      tpu.vector_store %arg4[%c0_17, %c0_18], %18 {strides = array<i32>} : memref<1x8xf32, #tpu.memory_space<vmem>>, vector<1x8xf32>,
      %cst_19 = arith.constant 0.000000e+00 : f32
      %20 = vector.broadcast %cst_19 : f32 to vector<1x8xf32>
      %c0_20 = arith.constant 0 : index
      %c0_21 = arith.constant 0 : index
      %21 = vector.load %arg5[%c0_20, %c0_21] : memref<1x8xf32, #tpu.memory_space<vmem>>, vector<1x8xf32>
      tpu.vector_store %arg5[%c0_20, %c0_21], %20 {strides = array<i32>} : memref<1x8xf32, #tpu.memory_space<vmem>>, vector<1x8xf32>,
    } else {
    }
    %c0 = arith.constant 0 : index
    %c0_1 = arith.constant 0 : index
    %3 = vector.load %arg1[%c0, %c0_1] : memref<128x36xbf16, #tpu.memory_space<vmem>>, vector<128x36xbf16>
    %c0_2 = arith.constant 0 : index
    %c0_3 = arith.constant 0 : index
    %4 = vector.load %arg2[%c0_2, %c0_3] : memref<36x8xbf16, #tpu.memory_space<vmem>>, vector<36x8xbf16>
    %cst = arith.constant dense<0.000000e+00> : vector<128x8xf32>
    %5 = tpu.matmul %3, %4, %cst {dimension_numbers = #tpu.dot_dimension_numbers<[1], [0], [0], [1], [0, 0, 1, 1], [], []>} : vector<128x36xbf16>, vector<36x8xbf16>, vector<128x8xf32> -> vector<128x8xf32>
    %c0_4 = arith.constant 0 : index
    %c0_5 = arith.constant 0 : index
    %6 = vector.load %arg3[%c0_4, %c0_5] : memref<128x8xf32, #tpu.memory_space<vmem>>, vector<128x8xf32>
    tpu.vector_store %arg3[%c0_4, %c0_5], %5 {strides = array<i32>} : memref<128x8xf32, #tpu.memory_space<vmem>>, vector<128x8xf32>,
    %c0_6 = arith.constant 0 : index
    %c0_7 = arith.constant 0 : index
    %7 = vector.load %arg4[%c0_6, %c0_7] : memref<1x8xf32, #tpu.memory_space<vmem>>, vector<1x8xf32>
    %cst_8 = arith.constant dense<0.000000e+00> : vector<8xf32>
    %8 = vector.multi_reduction <add>, %5, %cst_8 [0] : vector<128x8xf32> to vector<8xf32>
    %9 = vector.shape_cast %8 : vector<8xf32> to vector<1x8xf32>
    %10 = arith.addf %7, %9 : vector<1x8xf32>
    %c0_9 = arith.constant 0 : index
    %c0_10 = arith.constant 0 : index
    %11 = vector.load %arg4[%c0_9, %c0_10] : memref<1x8xf32, #tpu.memory_space<vmem>>, vector<1x8xf32>
    tpu.vector_store %arg4[%c0_9, %c0_10], %10 {strides = array<i32>} : memref<1x8xf32, #tpu.memory_space<vmem>>, vector<1x8xf32>,
    %c0_11 = arith.constant 0 : index
    %c0_12 = arith.constant 0 : index
    %12 = vector.load %arg5[%c0_11, %c0_12] : memref<1x8xf32, #tpu.memory_space<vmem>>, vector<1x8xf32>
    %13 = arith.mulf %5, %5 : vector<128x8xf32>
    %cst_13 = arith.constant dense<0.000000e+00> : vector<8xf32>
    %14 = vector.multi_reduction <add>, %13, %cst_13 [0] : vector<128x8xf32> to vector<8xf32>
    %15 = vector.shape_cast %14 : vector<8xf32> to vector<1x8xf32>
    %16 = arith.addf %12, %15 : vector<1x8xf32>
    %c0_14 = arith.constant 0 : index
    %c0_15 = arith.constant 0 : index
    %17 = vector.load %arg5[%c0_14, %c0_15] : memref<1x8xf32, #tpu.memory_space<vmem>>, vector<1x8xf32>
    tpu.vector_store %arg5[%c0_14, %c0_15], %16 {strides = array<i32>} : memref<1x8xf32, #tpu.memory_space<vmem>>, vector<1x8xf32>,
    return
  }
  func.func @transform_0(%arg0: i32) -> (i32, i32) {
    %c0_i32 = arith.constant 0 : i32
    %c0_i32_0 = arith.constant 0 : i32
    return %arg0, %c0_i32 : i32, i32
  }
  func.func @transform_1(%arg0: i32) -> (i32, i32) {
    %c0_i32 = arith.constant 0 : i32
    %c0_i32_0 = arith.constant 0 : i32
    %c0_i32_1 = arith.constant 0 : i32
    return %c0_i32, %c0_i32_0 : i32, i32
  }
  func.func @transform_2(%arg0: i32) -> (i32, i32) {
    %c0_i32 = arith.constant 0 : i32
    %c0_i32_0 = arith.constant 0 : i32
    return %arg0, %c0_i32 : i32, i32
  }
  func.func @transform_3(%arg0: i32) -> (i32, i32) {
    %c0_i32 = arith.constant 0 : i32
    %c0_i32_0 = arith.constant 0 : i32
    %c0_i32_1 = arith.constant 0 : i32
    return %c0_i32, %c0_i32_0 : i32, i32
  }
  func.func @transform_4(%arg0: i32) -> (i32, i32) {
    %c0_i32 = arith.constant 0 : i32
    %c0_i32_0 = arith.constant 0 : i32
    %c0_i32_1 = arith.constant 0 : i32
    return %c0_i32, %c0_i32_0 : i32, i32
  }
}

module attributes {stable_mosaic.version = 11 : i64} {
  func.func @_bn_lrelu_kernel(%arg0: i32, %arg1: memref<8x128xf32, #tpu.memory_space<vmem>>, %arg2: memref<1x128xf32, #tpu.memory_space<vmem>>, %arg3: memref<1x128xf32, #tpu.memory_space<vmem>>, %arg4: memref<8x128xf32, #tpu.memory_space<vmem>>) attributes {dimension_semantics = [#tpu.dimension_semantics<parallel>], iteration_bounds = array<i64: 1>, scalar_prefetch = 0 : i64, scratch_operands = 0 : i64, tpu.core_type = #tpu.core_type<tc>, window_params = [{transform_indices = @transform_0, window_bounds = array<i64: 8, 128>}, {pipeline_mode = #tpu.pipeline_mode<synchronous>, transform_indices = @transform_1, window_bounds = array<i64: 1, 128>}, {pipeline_mode = #tpu.pipeline_mode<synchronous>, transform_indices = @transform_2, window_bounds = array<i64: 1, 128>}, {transform_indices = @transform_3, window_bounds = array<i64: 8, 128>}]} {
    %c0 = arith.constant 0 : index
    %c0_0 = arith.constant 0 : index
    %0 = vector.load %arg1[%c0, %c0_0] : memref<8x128xf32, #tpu.memory_space<vmem>>, vector<8x128xf32>
    %c0_1 = arith.constant 0 : index
    %c0_2 = arith.constant 0 : index
    %1 = vector.load %arg2[%c0_1, %c0_2] : memref<1x128xf32, #tpu.memory_space<vmem>>, vector<1x128xf32>
    %2 = vector.broadcast %1 : vector<1x128xf32> to vector<8x128xf32>
    %3 = arith.mulf %0, %2 : vector<8x128xf32>
    %c0_3 = arith.constant 0 : index
    %c0_4 = arith.constant 0 : index
    %4 = vector.load %arg3[%c0_3, %c0_4] : memref<1x128xf32, #tpu.memory_space<vmem>>, vector<1x128xf32>
    %5 = vector.broadcast %4 : vector<1x128xf32> to vector<8x128xf32>
    %6 = arith.addf %3, %5 : vector<8x128xf32>
    %cst = arith.constant 0.000000e+00 : f32
    %7 = vector.broadcast %cst : f32 to vector<8x128xf32>
    %8 = arith.cmpf oge, %6, %7 : vector<8x128xf32>
    %cst_5 = arith.constant 2.000000e-01 : f32
    %9 = vector.broadcast %cst_5 : f32 to vector<8x128xf32>
    %10 = arith.mulf %9, %6 : vector<8x128xf32>
    %11 = arith.select %8, %6, %10 : vector<8x128xi1>, vector<8x128xf32>
    %c0_6 = arith.constant 0 : index
    %c0_7 = arith.constant 0 : index
    %12 = vector.load %arg4[%c0_6, %c0_7] : memref<8x128xf32, #tpu.memory_space<vmem>>, vector<8x128xf32>
    tpu.vector_store %arg4[%c0_6, %c0_7], %11 {strides = array<i32>} : memref<8x128xf32, #tpu.memory_space<vmem>>, vector<8x128xf32>,
    return
  }
  func.func @transform_0(%arg0: i32) -> (i32, i32) {
    %c0_i32 = arith.constant 0 : i32
    %c0_i32_0 = arith.constant 0 : i32
    return %arg0, %c0_i32 : i32, i32
  }
  func.func @transform_1(%arg0: i32) -> (i32, i32) {
    %c0_i32 = arith.constant 0 : i32
    %c0_i32_0 = arith.constant 0 : i32
    %c0_i32_1 = arith.constant 0 : i32
    return %c0_i32, %c0_i32_0 : i32, i32
  }
  func.func @transform_2(%arg0: i32) -> (i32, i32) {
    %c0_i32 = arith.constant 0 : i32
    %c0_i32_0 = arith.constant 0 : i32
    %c0_i32_1 = arith.constant 0 : i32
    return %c0_i32, %c0_i32_0 : i32, i32
  }
  func.func @transform_3(%arg0: i32) -> (i32, i32) {
    %c0_i32 = arith.constant 0 : i32
    %c0_i32_0 = arith.constant 0 : i32
    return %arg0, %c0_i32 : i32, i32
  }
}

</mosaic_0001>

<llo_original>
// kernel: down_forward.7
$region0: #{down_forward.7}
  #allocation0 [shape = 'u32[]', space=smem, size = 0x4, offset = 0x4, fixed_abs, tag = 'smem constant byte address 0x4 - core index']
  #allocation1 [shape = 'u32[144,128]{1,0:T(1,128)}', space=vmem, size = 0x12000, scoped, tag = 'internal scratch']
  %s0 = inlined_call_operand.vmem [shape: f32[16,128], index: 0, kind: input, shape index: {}]
  %s1 = inlined_call_operand.vmem [shape: f32[1,128], index: 1, kind: input, shape index: {}]
  %s2 = inlined_call_operand.vmem [shape: f32[1,128], index: 2, kind: input, shape index: {}]
  %s3 = inlined_call_operand.vmem [shape: f32[16,128], index: 3, kind: output, shape index: {}]
  %s4 = sld [smem:[#allocation0]]
  $region22: #{down_forward.7} parent=0
    _
  %s6 = ssub.s32 1, %s4
  %s7 = scalar_select 0, %s6, %s4
  // Predicated region
  $region2: #{down_forward.7} parent=0 // pred_check
    _
  $region3: #{down_forward.7} parent=0 // pred_check_branch
    %9 = sbr.rel (0) target = $region5
  $region4: #{down_forward.7} parent=0 // pred_region
    _
  $region5: #{down_forward.7} parent=0 // pred_fallthru
    _
  // Predicated region
  $region6: #{down_forward.7} parent=0 // pred_check
    _
  $region7: #{down_forward.7} parent=0 // pred_check_branch
    %11 = sbr.rel (0) target = $region9
  $region8: #{down_forward.7} parent=0 // pred_region
    _
  $region9: #{down_forward.7} parent=0 // pred_fallthru
    _
  // Predicated region
  $region10: #{down_forward.7} parent=0 // pred_check
    _
  $region11: #{down_forward.7} parent=0 // pred_check_branch
    %13 = sbr.rel (0) target = $region13
  $region12: #{down_forward.7} parent=0 // pred_region
    _
  $region13: #{down_forward.7} parent=0 // pred_fallthru
    _
  %v14 = vld [vmem:[%s0] sm:$0xff]
  %v15 = vld [vmem:[%s0 + $0x8] sm:$0xff]
  %v16 = vld [vmem:[%s1] sm:$0x1]
  %v18 = vlaneseq
  %v19 = vshrl.u32 %v18, 7
  %v20 = vsub.s32 0, %v19
  %v21 = vrot.slane %v16, %v20
  %v23 = vmul.f32 %v14, %v21
  %v24 = vmul.f32 %v15, %v21
  %v25 = vld [vmem:[%s2] sm:$0x1]
  %v27 = vlaneseq
  %v28 = vshrl.u32 %v27, 7
  %v29 = vsub.s32 0, %v28
  %v30 = vrot.slane %v25, %v29
  %v32 = vadd.f32 %v23, %v30
  %v33 = vadd.f32 %v24, %v30
  %vm34 = vcmp.ge.f32.partialorder %v32, 0.0
  %vm35 = vcmp.ge.f32.partialorder %v33, 0.0
  %v36 = vmul.f32 %v32, 0.2
  %v37 = vmul.f32 %v33, 0.2
  %v38 = vsel %vm34, %v32, %v36
  %v39 = vsel %vm35, %v33, %v37
  %40 = vst [vmem:[%s3] sm:$0xff] %v38
  %41 = vst [vmem:[%s3 + $0x8] sm:$0xff] %v39
  // Predicated region
  $region14: #{down_forward.7} parent=0 // pred_check
    _
  $region15: #{down_forward.7} parent=0 // pred_check_branch
    %43 = sbr.rel (0) target = $region17
  $region16: #{down_forward.7} parent=0 // pred_region
    _
  $region17: #{down_forward.7} parent=0 // pred_fallthru
    _
  // Predicated region
  $region18: #{down_forward.7} parent=0 // pred_check
    _
  $region19: #{down_forward.7} parent=0 // pred_check_branch
    %45 = sbr.rel (0) target = $region21
  $region20: #{down_forward.7} parent=0 // pred_region
    _
  $region21: #{down_forward.7} parent=0 // pred_fallthru
    _

// kernel: down_forward.6
$region0: #{down_forward.6}
  #allocation0 [shape = 'u32[]', space=smem, size = 0x4, offset = 0x4, fixed_abs, tag = 'smem constant byte address 0x4 - core index']
  #allocation1 [shape = 'u32[144,128]{1,0:T(1,128)}', space=vmem, size = 0x12000, scoped, tag = 'internal scratch']
  %s0 = inlined_call_operand.vmem [shape: bf16[512,36], index: 0, kind: input, shape index: {}]
  %s1 = inlined_call_operand.vmem [shape: bf16[36,4], index: 1, kind: input, shape index: {}]
  %s2 = inlined_call_operand.vmem [shape: f32[512,4], index: 2, kind: output, shape index: {0}]
  %s3 = inlined_call_operand.vmem [shape: f32[1,4], index: 3, kind: output, shape index: {1}]
  %s4 = inlined_call_operand.vmem [shape: f32[1,4], index: 4, kind: output, shape index: {2}]
  %5 = xla_tuple %s2, %s3, %s4
  %s6 = sld [smem:[#allocation0]]
  $region61: #{down_forward.6} parent=0
    _
  %s8 = ssub.s32 1, %s6
  %s9 = scalar_select 0, %s8, %s6
  loop: start=0, step=1, limit=4
  $region2: #{down_forward.6} parent=0 // loop_pre_header
    _
  $region3: #{down_forward.6} parent=0 // loop_header
    %s11 = sphi 0, %s15
    %p12 = scmp.ge.s32.totalorder %s11, 4
    %s21 = sphi 0, %s23
    %s24 = sphi 0, %s21
    %s25 = sphi 0, %s24
    %s41 = sphi 0, %s25
    %s45 = sphi 0, %s45
    %s47 = sphi 0, %s45
    %s48 = sphi 0, %s47
    %s62 = sphi 0, %s48
    %s68 = sphi 0, %s70
    %s71 = sphi 0, %s68
    %s72 = sphi 0, %s71
    %s88 = sphi 0, %s72
    %s92 = sphi 0, %s92
    %s94 = sphi 0, %s92
    %s95 = sphi 0, %s94
    %s109 = sphi 0, %s95
    %s113 = sphi 0, %s113
    %s115 = sphi 0, %s113
    %s116 = sphi 0, %s115
    %s130 = sphi 0, %s116
  $region4: #{down_forward.6} parent=0 // loop_header_branch
    %14 = sbr.rel (%p12) target = $region8
  $region5: #{down_forward.6} parent=0 // loop_body
    %s16 = ssub.s32 %s11, 1
    %s17 = ssub.s32 %s11, 2
    %s18 = sadd.s32 %s11, 1
    %s19 = ssub.s32 %s11, %s18
    %p20 = scmp.eq.s32.totalorder %s19, 0
    %s22 = sadd.s32 %s21, 1
    %s23 = scalar_select %p20, %s21, %s22
    %p26 = pneg %p20
    %p27 = scmp.eq.s32.totalorder %s11, 1
    %p28 = por %p26, %p27
    %p29 = scmp.ne.s32.totalorder %s21, %s24
    %p30 = scmp.eq.s32.totalorder %s11, 0
    %p31 = por %p29, %p30
    %p32 = scmp.ne.s32.totalorder %s21, %s24
    %p33 = scmp.eq.s32.totalorder %s16, 1
    %p34 = por %p32, %p33
    %p35 = scmp.ne.s32.totalorder %s24, %s25
    %p36 = scmp.eq.s32.totalorder %s16, 0
    %p37 = por %p35, %p36
    %p38 = scmp.ne.s32.totalorder %s24, %s25
    %p39 = scmp.eq.s32.totalorder %s17, 1
    %p40 = por %p38, %p39
    %p42 = scmp.ne.s32.totalorder %s25, %s41
    %p43 = scmp.eq.s32.totalorder %s17, 0
    %p44 = por %p42, %p43
    %s46 = sadd.s32 %s45, 1
    %p49 = scmp.eq.s32.totalorder %s11, 1
    %p50 = scmp.ne.s32.totalorder %s45, %s47
    %p51 = scmp.eq.s32.totalorder %s11, 0
    %p52 = por %p50, %p51
    %p53 = scmp.ne.s32.totalorder %s45, %s47
    %p54 = scmp.eq.s32.totalorder %s16, 1
    %p55 = por %p53, %p54
    %p56 = scmp.ne.s32.totalorder %s47, %s48
    %p57 = scmp.eq.s32.totalorder %s16, 0
    %p58 = por %p56, %p57
    %p59 = scmp.ne.s32.totalorder %s47, %s48
    %p60 = scmp.eq.s32.totalorder %s17, 1
    %p61 = por %p59, %p60
    %p63 = scmp.ne.s32.totalorder %s48, %s62
    %p64 = scmp.eq.s32.totalorder %s17, 0
    %p65 = por %p63, %p64
    %s66 = ssub.s32 %s11, %s18
    %p67 = scmp.eq.s32.totalorder %s66, 0
    %s69 = sadd.s32 %s68, 1
    %s70 = scalar_select %p67, %s68, %s69
    %p73 = pneg %p67
    %p74 = scmp.eq.s32.totalorder %s11, 1
    %p75 = por %p73, %p74
    %p76 = scmp.ne.s32.totalorder %s68, %s71
    %p77 = scmp.eq.s32.totalorder %s11, 0
    %p78 = por %p76, %p77
    %p79 = scmp.ne.s32.totalorder %s68, %s71
    %p80 = scmp.eq.s32.totalorder %s16, 1
    %p81 = por %p79, %p80
    %p82 = scmp.ne.s32.totalorder %s71, %s72
    %p83 = scmp.eq.s32.totalorder %s16, 0
    %p84 = por %p82, %p83
    %p85 = scmp.ne.s32.totalorder %s71, %s72
    %p86 = scmp.eq.s32.totalorder %s17, 1
    %p87 = por %p85, %p86
    %p89 = scmp.ne.s32.totalorder %s72, %s88
    %p90 = scmp.eq.s32.totalorder %s17, 0
    %p91 = por %p89, %p90
    %s93 = sadd.s32 %s92, 1
    %p96 = scmp.eq.s32.totalorder %s11, 1
    %p97 = scmp.ne.s32.totalorder %s92, %s94
    %p98 = scmp.eq.s32.totalorder %s11, 0
    %p99 = por %p97, %p98
    %p100 = scmp.ne.s32.totalorder %s92, %s94
    %p101 = scmp.eq.s32.totalorder %s16, 1
    %p102 = por %p100, %p101
    %p103 = scmp.ne.s32.totalorder %s94, %s95
    %p104 = scmp.eq.s32.totalorder %s16, 0
    %p105 = por %p103, %p104
    %p106 = scmp.ne.s32.totalorder %s94, %s95
    %p107 = scmp.eq.s32.totalorder %s17, 1
    %p108 = por %p106, %p107
    %p110 = scmp.ne.s32.totalorder %s95, %s109
    %p111 = scmp.eq.s32.totalorder %s17, 0
    %p112 = por %p110, %p111
    %s114 = sadd.s32 %s113, 1
    %p117 = scmp.eq.s32.totalorder %s11, 1
    %p118 = scmp.ne.s32.totalorder %s113, %s115
    %p119 = scmp.eq.s32.totalorder %s11, 0
    %p120 = por %p118, %p119
    %p121 = scmp.ne.s32.totalorder %s113, %s115
    %p122 = scmp.eq.s32.totalorder %s16, 1
    %p123 = por %p121, %p122
    %p124 = scmp.ne.s32.totalorder %s115, %s116
    %p125 = scmp.eq.s32.totalorder %s16, 0
    %p126 = por %p124, %p125
    %p127 = scmp.ne.s32.totalorder %s115, %s116
    %p128 = scmp.eq.s32.totalorder %s17, 1
    %p129 = por %p127, %p128
    %p131 = scmp.ne.s32.totalorder %s116, %s130
    %p132 = scmp.eq.s32.totalorder %s17, 0
    %p133 = por %p131, %p132
    %p134 = scmp.le.s32.totalorder 1, %s11
    %p135 = scmp.lt.s32.totalorder %s11, 3
    %p136 = pnand %p134, %p135
    %p137 = pneg %p136
    // Predicated region
    $region9: #{down_forward.6} parent=5 // pred_check
      _
    $region10: #{down_forward.6} parent=5 // pred_check_branch
      %139 = sbr.rel (%p136) target = $region12
    $region11: #{down_forward.6} parent=5 // pred_region
      %s140 = ssub.s32 %s11, 1
      // Predicated region
      $region13: #{down_forward.6} parent=11 // pred_check
        %p141 = pneg %p58
      $region14: #{down_forward.6} parent=11 // pred_check_branch
        %143 = sbr.rel (%p141) target = $region16
      $region15: #{down_forward.6} parent=11 // pred_region
        _
      $region16: #{down_forward.6} parent=11 // pred_fallthru
        _
    $region12: #{down_forward.6} parent=5 // pred_fallthru
      _
    %p144 = scmp.lt.s32.totalorder %s11, 2
    // Predicated region
    $region17: #{down_forward.6} parent=5 // pred_check
      %p145 = pneg %p144
    $region18: #{down_forward.6} parent=5 // pred_check_branch
      %147 = sbr.rel (%p145) target = $region20
    $region19: #{down_forward.6} parent=5 // pred_region
      // Predicated region
      $region21: #{down_forward.6} parent=19 // pred_check
        %p148 = pneg %p31
      $region22: #{down_forward.6} parent=19 // pred_check_branch
        %150 = sbr.rel (%p148) target = $region24
      $region23: #{down_forward.6} parent=19 // pred_region
        %s151 = smul.u32 32, %s11
        %p152 = scmp.lt.s32.totalorder %s151, 63
        %s153 = scalar_select %p152, %s151, 63
        %s154 = smul.addr %s153, 4
        %s155 = scalar_lea.vmem %s0, %s154
        %s156 = smul.u32 32, %s11
      $region24: #{down_forward.6} parent=19 // pred_fallthru
        _
    $region20: #{down_forward.6} parent=5 // pred_fallthru
      _
    %p157 = scmp.le.s32.totalorder 1, %s11
    %p158 = scmp.lt.s32.totalorder %s11, 3
    %p159 = pnand %p157, %p158
    %p160 = pneg %p159
    // Predicated region
    $region25: #{down_forward.6} parent=5 // pred_check
      _
    $region26: #{down_forward.6} parent=5 // pred_check_branch
      %162 = sbr.rel (%p159) target = $region28
    $region27: #{down_forward.6} parent=5 // pred_region
      %s163 = ssub.s32 %s11, 1
      %s164 = smul.u32 32, %s16
      %p165 = scmp.lt.s32.totalorder %s164, 63
      %s166 = scalar_select %p165, %s164, 63
      %s167 = smul.addr %s166, 4
      %s168 = scalar_lea.vmem %s0, %s167
      %p169 = pneg %p37
      %p170 = pneg %p34
      %p171 = pneg %p58
      %p172 = pneg %p55
      %p173 = pneg %p84
      %p174 = pneg %p81
      %s175 = smul.u32 32, %s16
      %p176 = scmp.lt.s32.totalorder %s175, 63
      %s177 = scalar_select %p176, %s175, 63
      %s178 = smul.addr %s177, 8
      %s179 = scalar_lea.vmem %s2, %s178
      %p180 = pneg %p105
      %p181 = pneg %p102
      %p182 = pneg %p126
      %p183 = pneg %p123
      %s184 = smul.u32 32, %s16
      %p185 = scmp.lt.s32.totalorder %s184, 63
      %s186 = scalar_select %p185, %s184, 63
      %s187 = smul.addr %s186, 4
      %s188 = scalar_lea.vmem %s0, %s187
      %s189 = smul.u32 32, %s16
      %s190 = smul.u32 32, %s16
      %p191 = scmp.lt.s32.totalorder %s190, 63
      %s192 = scalar_select %p191, %s190, 63
      %s193 = smul.addr %s192, 8
      %s194 = scalar_lea.vmem %s2, %s193
      %s195 = smul.u32 32, %s16
      %p197 = scmp.eq.s32.totalorder %s16, 0
      // Predicated region
      $region29: #{down_forward.6} parent=27 // pred_check
        %p198 = pneg %p197
      $region30: #{down_forward.6} parent=27 // pred_check_branch
        %200 = sbr.rel (%p198) target = $region32
      $region31: #{down_forward.6} parent=27 // pred_region
        %vm201 = vcmask 24576
        %202 = vst.msk [vmem:[%s3] sm:$0x1] %vm201, 0.0
        %203 = vst.msk [vmem:[%s4] sm:$0x1] %vm201, 0.0
      $region32: #{down_forward.6} parent=27 // pred_fallthru
        _
      %v204 = vld [vmem:[%s188] sm:$0xf]
      %v205 = vld [vmem:[%s188 + $0x4] sm:$0xf]
      %v206 = vld [vmem:[%s188 + $0x8] sm:$0xf]
      %v207 = vld [vmem:[%s188 + $0xc] sm:$0xf]
      %v208 = vld [vmem:[%s188 + $0x10] sm:$0xf]
      %v209 = vld [vmem:[%s188 + $0x14] sm:$0xf]
      %v210 = vld [vmem:[%s188 + $0x18] sm:$0xf]
      %v211 = vld [vmem:[%s188 + $0x1c] sm:$0xf]
      %v212 = vld [vmem:[%s188 + $0x20] sm:$0xf]
      %v213 = vld [vmem:[%s188 + $0x24] sm:$0xf]
      %v214 = vld [vmem:[%s188 + $0x28] sm:$0xf]
      %v215 = vld [vmem:[%s188 + $0x2c] sm:$0xf]
      %v216 = vld [vmem:[%s188 + $0x30] sm:$0xf]
      %v217 = vld [vmem:[%s188 + $0x34] sm:$0xf]
      %v218 = vld [vmem:[%s188 + $0x38] sm:$0xf]
      %v219 = vld [vmem:[%s188 + $0x3c] sm:$0xf]
      %v220 = vld [vmem:[%s188 + $0x40] sm:$0xf]
      %v221 = vld [vmem:[%s188 + $0x44] sm:$0xf]
      %v222 = vld [vmem:[%s188 + $0x48] sm:$0xf]
      %v223 = vld [vmem:[%s188 + $0x4c] sm:$0xf]
      %v224 = vld [vmem:[%s188 + $0x50] sm:$0xf]
      %v225 = vld [vmem:[%s188 + $0x54] sm:$0xf]
      %v226 = vld [vmem:[%s188 + $0x58] sm:$0xf]
      %v227 = vld [vmem:[%s188 + $0x5c] sm:$0xf]
      %v228 = vld [vmem:[%s188 + $0x60] sm:$0xf]
      %v229 = vld [vmem:[%s188 + $0x64] sm:$0xf]
      %v230 = vld [vmem:[%s188 + $0x68] sm:$0xf]
      %v231 = vld [vmem:[%s188 + $0x6c] sm:$0xf]
      %v232 = vld [vmem:[%s188 + $0x70] sm:$0xf]
      %v233 = vld [vmem:[%s188 + $0x74] sm:$0xf]
      %v234 = vld [vmem:[%s188 + $0x78] sm:$0xf]
      %v235 = vld [vmem:[%s188 + $0x7c] sm:$0xf]
      %v236 = vld [vmem:[%s1] sm:$0xf]
      %v237 = vld [vmem:[%s1 + $0x4] sm:$0xf]
      %v238 = vld [vmem:[%s1 + $0x8] sm:$0xf]
      %v239 = vld [vmem:[%s1 + $0xc] sm:$0xf]
      %v240 = vld [vmem:[%s1 + $0x10] sm:$0x3]
      %v273 = vunpack.c.l.b16 %v204
      %v274 = vunpack.c.l.b16 %v205
      %v275 = vunpack.c.l.b16 %v206
      %v276 = vunpack.c.l.b16 %v207
      %v277 = vunpack.c.l.b16 %v208
      %v278 = vunpack.c.l.b16 %v209
      %v279 = vunpack.c.l.b16 %v210
      %v280 = vunpack.c.l.b16 %v211
      %v281 = vunpack.c.l.b16 %v212
      %v282 = vunpack.c.l.b16 %v213
      %v283 = vunpack.c.l.b16 %v214
      %v284 = vunpack.c.l.b16 %v215
      %v285 = vunpack.c.l.b16 %v216
      %v286 = vunpack.c.l.b16 %v217
      %v287 = vunpack.c.l.b16 %v218
      %v288 = vunpack.c.l.b16 %v219
      %v289 = vunpack.c.l.b16 %v220
      %v290 = vunpack.c.l.b16 %v221
      %v291 = vunpack.c.l.b16 %v222
      %v292 = vunpack.c.l.b16 %v223
      %v293 = vunpack.c.l.b16 %v224
      %v294 = vunpack.c.l.b16 %v225
      %v295 = vunpack.c.l.b16 %v226
      %v296 = vunpack.c.l.b16 %v227
      %v297 = vunpack.c.l.b16 %v228
      %v298 = vunpack.c.l.b16 %v229
      %v299 = vunpack.c.l.b16 %v230
      %v300 = vunpack.c.l.b16 %v231
      %v301 = vunpack.c.l.b16 %v232
      %v302 = vunpack.c.l.b16 %v233
      %v303 = vunpack.c.l.b16 %v234
      %v304 = vunpack.c.l.b16 %v235
      %v305 = vpack.c.b16 %v274, %v273
      %v306 = vpack.c.b16 %v276, %v275
      %v307 = vpack.c.b16 %v278, %v277
      %v308 = vpack.c.b16 %v280, %v279
      %v309 = vpack.c.b16 %v282, %v281
      %v310 = vpack.c.b16 %v284, %v283
      %v311 = vpack.c.b16 %v286, %v285
      %v312 = vpack.c.b16 %v288, %v287
      %v313 = vpack.c.b16 %v290, %v289
      %v314 = vpack.c.b16 %v292, %v291
      %v315 = vpack.c.b16 %v294, %v293
      %v316 = vpack.c.b16 %v296, %v295
      %v317 = vpack.c.b16 %v298, %v297
      %v318 = vpack.c.b16 %v300, %v299
      %v319 = vpack.c.b16 %v302, %v301
      %v320 = vpack.c.b16 %v304, %v303
      %v326 = vunpack.c.l.b16 %v236
      %v327 = vunpack.c.l.b16 %v237
      %v328 = vunpack.c.l.b16 %v238
      %v329 = vunpack.c.l.b16 %v239
      %v330 = vunpack.c.l.b16 %v240
      %v331 = vpack.c.b16 %v327, %v326
      %v332 = vpack.c.b16 %v329, %v328
      %v333 = vpack.c.b16 %v330, %v330
      %vm336 = vcmask 293888
      %v338 = vsel %vm336, %v305, 0
      %v341 = vsel %vm336, %v306, 0
      %v344 = vsel %vm336, %v307, 0
      %v347 = vsel %vm336, %v308, 0
      %v350 = vsel %vm336, %v309, 0
      %v353 = vsel %vm336, %v310, 0
      %v356 = vsel %vm336, %v311, 0
      %v359 = vsel %vm336, %v312, 0
      %v362 = vsel %vm336, %v313, 0
      %v365 = vsel %vm336, %v314, 0
      %v368 = vsel %vm336, %v315, 0
      %v371 = vsel %vm336, %v316, 0
      %v374 = vsel %vm336, %v317, 0
      %v377 = vsel %vm336, %v318, 0
      %v380 = vsel %vm336, %v319, 0
      %v383 = vsel %vm336, %v320, 0
      %vm385 = vcmask 1041408
      %v387 = vsel %vm385, %v333, 0
      %389 = vmatprep.subr.bf16.mxu0 0
      %390 = vmatpush1.bf16.msra.mxu0 %v331
      %391 = vmatprep.subr.bf16.mxu0 0
      %392 = vmatpush1.bf16.msra.mxu0 %v332
      %393 = vmatprep.subr.bf16.mxu0 0
      %394 = vmatpush1.bf16.msra.mxu0 %v387
      %395 = vmatprep.subr.bf16.mxu0 0
      %396 = vmatpush1.bf16.msra.mxu0 0
      %397 = vmatprep.subr.bf16.mxu0 0
      %398 = vmatpush1.bf16.msra.mxu0 0
      %399 = vmatprep.subr.bf16.mxu0 0
      %400 = vmatpush1.bf16.msra.mxu0 0
      %401 = vmatprep.subr.bf16.mxu0 0
      %402 = vmatpush1.bf16.msra.mxu0 0
      %403 = vmatprep.subr.bf16.mxu0 0
      %404 = vmatpush1.bf16.msra.mxu0 0
      %405 = vmatprep.subr.bf16.mxu0 0
      %406 = vmatpush1.bf16.msra.mxu0 0
      %407 = vmatprep.subr.bf16.mxu0 0
      %408 = vmatpush1.bf16.msra.mxu0 0
      %409 = vmatprep.subr.bf16.mxu0 0
      %410 = vmatpush1.bf16.msra.mxu0 0
      %411 = vmatprep.subr.bf16.mxu0 0
      %412 = vmatpush1.bf16.msra.mxu0 0
      %413 = vmatprep.subr.bf16.mxu0 0
      %414 = vmatpush1.bf16.msra.mxu0 0
      %415 = vmatprep.subr.bf16.mxu0 0
      %416 = vmatpush1.bf16.msra.mxu0 0
      %417 = vmatprep.subr.bf16.mxu0 0
      %418 = vmatpush1.bf16.msra.mxu0 0
      %419 = vmatprep.subr.bf16.mxu0 0
      %420 = vmatpush1.bf16.msra.mxu0 0
      %421 = vmatprep.mubr.bf16.mxu0 0
      %422 = vmatmul.mubr.bf16.gmra.mrb[0].mxu0 %v338
      %v423 = vpop.f32.mrb[0].mxu0
      %v424 = vadd.f32 0.0, %v423
      %v425 = vpop.f32.mrb[0].mxu0
      %v426 = vpop.f32.mrb[0].mxu0
      %v427 = vadd.f32 0.0, %v426
      %v428 = vpop.f32.mrb[0].mxu0
      %429 = vmatprep.mubr.bf16.mxu0 0
      %430 = vmatmul.mubr.bf16.gmra.mrb[0].mxu0 %v341
      %v431 = vpop.f32.mrb[0].mxu0
      %v432 = vadd.f32 0.0, %v431
      %v433 = vpop.f32.mrb[0].mxu0
      %v434 = vpop.f32.mrb[0].mxu0
      %v435 = vadd.f32 0.0, %v434
      %v436 = vpop.f32.mrb[0].mxu0
      %437 = vmatprep.mubr.bf16.mxu0 0
      %438 = vmatmul.mubr.bf16.gmra.mrb[0].mxu0 %v344
      %v439 = vpop.f32.mrb[0].mxu0
      %v440 = vadd.f32 0.0, %v439
      %v441 = vpop.f32.mrb[0].mxu0
      %v442 = vpop.f32.mrb[0].mxu0
      %v443 = vadd.f32 0.0, %v442
      %v444 = vpop.f32.mrb[0].mxu0
      %445 = vmatprep.mubr.bf16.mxu0 0
      %446 = vmatmul.mubr.bf16.gmra.mrb[0].mxu0 %v347
      %v447 = vpop.f32.mrb[0].mxu0
      %v448 = vadd.f32 0.0, %v447
      %v449 = vpop.f32.mrb[0].mxu0
      %v450 = vpop.f32.mrb[0].mxu0
      %v451 = vadd.f32 0.0, %v450
      %v452 = vpop.f32.mrb[0].mxu0
      %453 = vmatprep.mubr.bf16.mxu0 0
      %454 = vmatmul.mubr.bf16.gmra.mrb[0].mxu0 %v350
      %v455 = vpop.f32.mrb[0].mxu0
      %v456 = vadd.f32 0.0, %v455
      %v457 = vpop.f32.mrb[0].mxu0
      %v458 = vpop.f32.mrb[0].mxu0
      %v459 = vadd.f32 0.0, %v458
      %v460 = vpop.f32.mrb[0].mxu0
      %461 = vmatprep.mubr.bf16.mxu0 0
      %462 = vmatmul.mubr.bf16.gmra.mrb[0].mxu0 %v353
      %v463 = vpop.f32.mrb[0].mxu0
      %v464 = vadd.f32 0.0, %v463
      %v465 = vpop.f32.mrb[0].mxu0
      %v466 = vpop.f32.mrb[0].mxu0
      %v467 = vadd.f32 0.0, %v466
      %v468 = vpop.f32.mrb[0].mxu0
      %469 = vmatprep.mubr.bf16.mxu0 0
      %470 = vmatmul.mubr.bf16.gmra.mrb[0].mxu0 %v356
      %v471 = vpop.f32.mrb[0].mxu0
      %v472 = vadd.f32 0.0, %v471
      %v473 = vpop.f32.mrb[0].mxu0
      %v474 = vpop.f32.mrb[0].mxu0
      %v475 = vadd.f32 0.0, %v474
      %v476 = vpop.f32.mrb[0].mxu0
      %477 = vmatprep.mubr.bf16.mxu0 0
      %478 = vmatmul.mubr.bf16.gmra.mrb[0].mxu0 %v359
      %v479 = vpop.f32.mrb[0].mxu0
      %v480 = vadd.f32 0.0, %v479
      %v481 = vpop.f32.mrb[0].mxu0
      %v482 = vpop.f32.mrb[0].mxu0
      %v483 = vadd.f32 0.0, %v482
      %v484 = vpop.f32.mrb[0].mxu0
      %485 = vmatprep.mubr.bf16.mxu0 0
      %486 = vmatmul.mubr.bf16.gmra.mrb[0].mxu0 %v362
      %v487 = vpop.f32.mrb[0].mxu0
      %v488 = vadd.f32 0.0, %v487
      %v489 = vpop.f32.mrb[0].mxu0
      %v490 = vpop.f32.mrb[0].mxu0
      %v491 = vadd.f32 0.0, %v490
      %v492 = vpop.f32.mrb[0].mxu0
      %493 = vmatprep.mubr.bf16.mxu0 0
      %494 = vmatmul.mubr.bf16.gmra.mrb[0].mxu0 %v365
      %v495 = vpop.f32.mrb[0].mxu0
      %v496 = vadd.f32 0.0, %v495
      %v497 = vpop.f32.mrb[0].mxu0
      %v498 = vpop.f32.mrb[0].mxu0
      %v499 = vadd.f32 0.0, %v498
      %v500 = vpop.f32.mrb[0].mxu0
      %501 = vmatprep.mubr.bf16.mxu0 0
      %502 = vmatmul.mubr.bf16.gmra.mrb[0].mxu0 %v368
      %v503 = vpop.f32.mrb[0].mxu0
      %v504 = vadd.f32 0.0, %v503
      %v505 = vpop.f32.mrb[0].mxu0
      %v506 = vpop.f32.mrb[0].mxu0
      %v507 = vadd.f32 0.0, %v506
      %v508 = vpop.f32.mrb[0].mxu0
      %509 = vmatprep.mubr.bf16.mxu0 0
      %510 = vmatmul.mubr.bf16.gmra.mrb[0].mxu0 %v371
      %v511 = vpop.f32.mrb[0].mxu0
      %v512 = vadd.f32 0.0, %v511
      %v513 = vpop.f32.mrb[0].mxu0
      %v514 = vpop.f32.mrb[0].mxu0
      %v515 = vadd.f32 0.0, %v514
      %v516 = vpop.f32.mrb[0].mxu0
      %517 = vmatprep.mubr.bf16.mxu0 0
      %518 = vmatmul.mubr.bf16.gmra.mrb[0].mxu0 %v374
      %v519 = vpop.f32.mrb[0].mxu0
      %v520 = vadd.f32 0.0, %v519
      %v521 = vpop.f32.mrb[0].mxu0
      %v522 = vpop.f32.mrb[0].mxu0
      %v523 = vadd.f32 0.0, %v522
      %v524 = vpop.f32.mrb[0].mxu0
      %525 = vmatprep.mubr.bf16.mxu0 0
      %526 = vmatmul.mubr.bf16.gmra.mrb[0].mxu0 %v377
      %v527 = vpop.f32.mrb[0].mxu0
      %v528 = vadd.f32 0.0, %v527
      %v529 = vpop.f32.mrb[0].mxu0
      %v530 = vpop.f32.mrb[0].mxu0
      %v531 = vadd.f32 0.0, %v530
      %v532 = vpop.f32.mrb[0].mxu0
      %533 = vmatprep.mubr.bf16.mxu0 0
      %534 = vmatmul.mubr.bf16.gmra.mrb[0].mxu0 %v380
      %v535 = vpop.f32.mrb[0].mxu0
      %v536 = vadd.f32 0.0, %v535
      %v537 = vpop.f32.mrb[0].mxu0
      %v538 = vpop.f32.mrb[0].mxu0
      %v539 = vadd.f32 0.0, %v538
      %v540 = vpop.f32.mrb[0].mxu0
      %541 = vmatprep.mubr.bf16.mxu0 0
      %542 = vmatmul.mubr.bf16.gmra.mrb[0].mxu0 %v383
      %v543 = vpop.f32.mrb[0].mxu0
      %v544 = vadd.f32 0.0, %v543
      %v545 = vpop.f32.mrb[0].mxu0
      %v546 = vpop.f32.mrb[0].mxu0
      %v547 = vadd.f32 0.0, %v546
      %v548 = vpop.f32.mrb[0].mxu0
      %549 = vdwg.mxu0
      %vm550 = vcmask 31744
      %551 = vst.msk [vmem:[%s194] sm:$0xff] %vm550, %v424
      %552 = vst.msk [vmem:[%s194 + $0x8] sm:$0xff] %vm550, %v427
      %553 = vst.msk [vmem:[%s194 + $0x10] sm:$0xff] %vm550, %v432
      %554 = vst.msk [vmem:[%s194 + $0x18] sm:$0xff] %vm550, %v435
      %555 = vst.msk [vmem:[%s194 + $0x20] sm:$0xff] %vm550, %v440
      %556 = vst.msk [vmem:[%s194 + $0x28] sm:$0xff] %vm550, %v443
      %557 = vst.msk [vmem:[%s194 + $0x30] sm:$0xff] %vm550, %v448
      %558 = vst.msk [vmem:[%s194 + $0x38] sm:$0xff] %vm550, %v451
      %559 = vst.msk [vmem:[%s194 + $0x40] sm:$0xff] %vm550, %v456
      %560 = vst.msk [vmem:[%s194 + $0x48] sm:$0xff] %vm550, %v459
      %561 = vst.msk [vmem:[%s194 + $0x50] sm:$0xff] %vm550, %v464
      %562 = vst.msk [vmem:[%s194 + $0x58] sm:$0xff] %vm550, %v467
      %563 = vst.msk [vmem:[%s194 + $0x60] sm:$0xff] %vm550, %v472
      %564 = vst.msk [vmem:[%s194 + $0x68] sm:$0xff] %vm550, %v475
      %565 = vst.msk [vmem:[%s194 + $0x70] sm:$0xff] %vm550, %v480
      %566 = vst.msk [vmem:[%s194 + $0x78] sm:$0xff] %vm550, %v483
      %567 = vst.msk [vmem:[%s194 + $0x80] sm:$0xff] %vm550, %v488
      %568 = vst.msk [vmem:[%s194 + $0x88] sm:$0xff] %vm550, %v491
      %569 = vst.msk [vmem:[%s194 + $0x90] sm:$0xff] %vm550, %v496
      %570 = vst.msk [vmem:[%s194 + $0x98] sm:$0xff] %vm550, %v499
      %571 = vst.msk [vmem:[%s194 + $0xa0] sm:$0xff] %vm550, %v504
      %572 = vst.msk [vmem:[%s194 + $0xa8] sm:$0xff] %vm550, %v507
      %573 = vst.msk [vmem:[%s194 + $0xb0] sm:$0xff] %vm550, %v512
      %574 = vst.msk [vmem:[%s194 + $0xb8] sm:$0xff] %vm550, %v515
      %575 = vst.msk [vmem:[%s194 + $0xc0] sm:$0xff] %vm550, %v520
      %576 = vst.msk [vmem:[%s194 + $0xc8] sm:$0xff] %vm550, %v523
      %577 = vst.msk [vmem:[%s194 + $0xd0] sm:$0xff] %vm550, %v528
      %578 = vst.msk [vmem:[%s194 + $0xd8] sm:$0xff] %vm550, %v531
      %579 = vst.msk [vmem:[%s194 + $0xe0] sm:$0xff] %vm550, %v536
      %580 = vst.msk [vmem:[%s194 + $0xe8] sm:$0xff] %vm550, %v539
      %581 = vst.msk [vmem:[%s194 + $0xf0] sm:$0xff] %vm550, %v544
      %582 = vst.msk [vmem:[%s194 + $0xf8] sm:$0xff] %vm550, %v547
      %v583 = vld [vmem:[%s3] sm:$0x1]
      %v584 = vsel %vm550, %v424, 0.0
      %v585 = vsel %vm550, %v427, 0.0
      %v586 = vadd.f32 %v584, %v585
      %v587 = vsel %vm550, %v432, 0.0
      %v588 = vadd.f32 %v586, %v587
      %v589 = vsel %vm550, %v435, 0.0
      %v590 = vadd.f32 %v588, %v589
      %v591 = vsel %vm550, %v440, 0.0
      %v592 = vadd.f32 %v590, %v591
      %v593 = vsel %vm550, %v443, 0.0
      %v594 = vadd.f32 %v592, %v593
      %v595 = vsel %vm550, %v448, 0.0
      %v596 = vadd.f32 %v594, %v595
      %v597 = vsel %vm550, %v451, 0.0
      %v598 = vadd.f32 %v596, %v597
      %v599 = vsel %vm550, %v456, 0.0
      %v600 = vadd.f32 %v598, %v599
      %v601 = vsel %vm550, %v459, 0.0
      %v602 = vadd.f32 %v600, %v601
      %v603 = vsel %vm550, %v464, 0.0
      %v604 = vadd.f32 %v602, %v603
      %v605 = vsel %vm550, %v467, 0.0
      %v606 = vadd.f32 %v604, %v605
      %v607 = vsel %vm550, %v472, 0.0
      %v608 = vadd.f32 %v606, %v607
      %v609 = vsel %vm550, %v475, 0.0
      %v610 = vadd.f32 %v608, %v609
      %v611 = vsel %vm550, %v480, 0.0
      %v612 = vadd.f32 %v610, %v611
      %v613 = vsel %vm550, %v483, 0.0
      %v614 = vadd.f32 %v612, %v613
      %v615 = vsel %vm550, %v488, 0.0
      %v616 = vadd.f32 %v614, %v615
      %v617 = vsel %vm550, %v491, 0.0
      %v618 = vadd.f32 %v616, %v617
      %v619 = vsel %vm550, %v496, 0.0
      %v620 = vadd.f32 %v618, %v619
      %v621 = vsel %vm550, %v499, 0.0
      %v622 = vadd.f32 %v620, %v621
      %v623 = vsel %vm550, %v504, 0.0
      %v624 = vadd.f32 %v622, %v623
      %v625 = vsel %vm550, %v507, 0.0
      %v626 = vadd.f32 %v624, %v625
      %v627 = vsel %vm550, %v512, 0.0
      %v628 = vadd.f32 %v626, %v627
      %v629 = vsel %vm550, %v515, 0.0
      %v630 = vadd.f32 %v628, %v629
      %v631 = vsel %vm550, %v520, 0.0
      %v632 = vadd.f32 %v630, %v631
      %v633 = vsel %vm550, %v523, 0.0
      %v634 = vadd.f32 %v632, %v633
      %v635 = vsel %vm550, %v528, 0.0
      %v636 = vadd.f32 %v634, %v635
      %v637 = vsel %vm550, %v531, 0.0
      %v638 = vadd.f32 %v636, %v637
      %v639 = vsel %vm550, %v536, 0.0
      %v640 = vadd.f32 %v638, %v639
      %v641 = vsel %vm550, %v539, 0.0
      %v642 = vadd.f32 %v640, %v641
      %v643 = vsel %vm550, %v544, 0.0
      %v644 = vadd.f32 %v642, %v643
      %v645 = vsel %vm550, %v547, 0.0
      %v646 = vadd.f32 %v644, %v645
      %v647 = vrot.slane %v646, 4
      %v648 = vadd.f32 %v646, %v647
      %v649 = vrot.slane %v648, 2
      %v650 = vadd.f32 %v648, %v649
      %v651 = vrot.slane %v650, 1
      %v652 = vadd.f32 %v650, %v651
      %v653 = vadd.f32 %v583, %v652
      %vm654 = vcmask 24576
      %655 = vst.msk [vmem:[%s3] sm:$0x1] %vm654, %v653
      %v656 = vld [vmem:[%s4] sm:$0x1]
      %v657 = vmul.f32 %v424, %v424
      %v658 = vmul.f32 %v427, %v427
      %v659 = vmul.f32 %v432, %v432
      %v660 = vmul.f32 %v435, %v435
      %v661 = vmul.f32 %v440, %v440
      %v662 = vmul.f32 %v443, %v443
      %v663 = vmul.f32 %v448, %v448
      %v664 = vmul.f32 %v451, %v451
      %v665 = vmul.f32 %v456, %v456
      %v666 = vmul.f32 %v459, %v459
      %v667 = vmul.f32 %v464, %v464
      %v668 = vmul.f32 %v467, %v467
      %v669 = vmul.f32 %v472, %v472
      %v670 = vmul.f32 %v475, %v475
      %v671 = vmul.f32 %v480, %v480
      %v672 = vmul.f32 %v483, %v483
      %v673 = vmul.f32 %v488, %v488
      %v674 = vmul.f32 %v491, %v491
      %v675 = vmul.f32 %v496, %v496
      %v676 = vmul.f32 %v499, %v499
      %v677 = vmul.f32 %v504, %v504
      %v678 = vmul.f32 %v507, %v507
      %v679 = vmul.f32 %v512, %v512
      %v680 = vmul.f32 %v515, %v515
      %v681 = vmul.f32 %v520, %v520
      %v682 = vmul.f32 %v523, %v523
      %v683 = vmul.f32 %v528, %v528
      %v684 = vmul.f32 %v531, %v531
      %v685 = vmul.f32 %v536, %v536
      %v686 = vmul.f32 %v539, %v539
      %v687 = vmul.f32 %v544, %v544
      %v688 = vmul.f32 %v547, %v547
      %v689 = vsel %vm550, %v657, 0.0
      %v690 = vsel %vm550, %v658, 0.0
      %v691 = vadd.f32 %v689, %v690
      %v692 = vsel %vm550, %v659, 0.0
      %v693 = vadd.f32 %v691, %v692
      %v694 = vsel %vm550, %v660, 0.0
      %v695 = vadd.f32 %v693, %v694
      %v696 = vsel %vm550, %v661, 0.0
      %v697 = vadd.f32 %v695, %v696
      %v698 = vsel %vm550, %v662, 0.0
      %v699 = vadd.f32 %v697, %v698
      %v700 = vsel %vm550, %v663, 0.0
      %v701 = vadd.f32 %v699, %v700
      %v702 = vsel %vm550, %v664, 0.0
      %v703 = vadd.f32 %v701, %v702
      %v704 = vsel %vm550, %v665, 0.0
      %v705 = vadd.f32 %v703, %v704
      %v706 = vsel %vm550, %v666, 0.0
      %v707 = vadd.f32 %v705, %v706
      %v708 = vsel %vm550, %v667, 0.0
      %v709 = vadd.f32 %v707, %v708
      %v710 = vsel %vm550, %v668, 0.0
      %v711 = vadd.f32 %v709, %v710
      %v712 = vsel %vm550, %v669, 0.0
      %v713 = vadd.f32 %v711, %v712
      %v714 = vsel %vm550, %v670, 0.0
      %v715 = vadd.f32 %v713, %v714
      %v716 = vsel %vm550, %v671, 0.0
      %v717 = vadd.f32 %v715, %v716
      %v718 = vsel %vm550, %v672, 0.0
      %v719 = vadd.f32 %v717, %v718
      %v720 = vsel %vm550, %v673, 0.0
      %v721 = vadd.f32 %v719, %v720
      %v722 = vsel %vm550, %v674, 0.0
      %v723 = vadd.f32 %v721, %v722
      %v724 = vsel %vm550, %v675, 0.0
      %v725 = vadd.f32 %v723, %v724
      %v726 = vsel %vm550, %v676, 0.0
      %v727 = vadd.f32 %v725, %v726
      %v728 = vsel %vm550, %v677, 0.0
      %v729 = vadd.f32 %v727, %v728
      %v730 = vsel %vm550, %v678, 0.0
      %v731 = vadd.f32 %v729, %v730
      %v732 = vsel %vm550, %v679, 0.0
      %v733 = vadd.f32 %v731, %v732
      %v734 = vsel %vm550, %v680, 0.0
      %v735 = vadd.f32 %v733, %v734
      %v736 = vsel %vm550, %v681, 0.0
      %v737 = vadd.f32 %v735, %v736
      %v738 = vsel %vm550, %v682, 0.0
      %v739 = vadd.f32 %v737, %v738
      %v740 = vsel %vm550, %v683, 0.0
      %v741 = vadd.f32 %v739, %v740
      %v742 = vsel %vm550, %v684, 0.0
      %v743 = vadd.f32 %v741, %v742
      %v744 = vsel %vm550, %v685, 0.0
      %v745 = vadd.f32 %v743, %v744
      %v746 = vsel %vm550, %v686, 0.0
      %v747 = vadd.f32 %v745, %v746
      %v748 = vsel %vm550, %v687, 0.0
      %v749 = vadd.f32 %v747, %v748
      %v750 = vsel %vm550, %v688, 0.0
      %v751 = vadd.f32 %v749, %v750
      %v752 = vrot.slane %v751, 4
      %v753 = vadd.f32 %v751, %v752
      %v754 = vrot.slane %v753, 2
      %v755 = vadd.f32 %v753, %v754
      %v756 = vrot.slane %v755, 1
      %v757 = vadd.f32 %v755, %v756
      %v758 = vadd.f32 %v656, %v757
      %759 = vst.msk [vmem:[%s4] sm:$0x1] %vm654, %v758
      %s760 = smul.u32 32, %s16
      %p761 = scmp.lt.s32.totalorder %s760, 63
      %s762 = scalar_select %p761, %s760, 63
      %s763 = smul.addr %s762, 8
      %s764 = scalar_lea.vmem %s2, %s763
      // Predicated region
      $region33: #{down_forward.6} parent=27 // pred_check
        %p765 = pneg %p81
      $region34: #{down_forward.6} parent=27 // pred_check_branch
        %767 = sbr.rel (%p765) target = $region36
      $region35: #{down_forward.6} parent=27 // pred_region
        %s768 = smul.u32 32, %s16
      $region36: #{down_forward.6} parent=27 // pred_fallthru
        _
      // Predicated region
      $region37: #{down_forward.6} parent=27 // pred_check
        %p769 = pneg %p102
      $region38: #{down_forward.6} parent=27 // pred_check_branch
        %771 = sbr.rel (%p769) target = $region40
      $region39: #{down_forward.6} parent=27 // pred_region
        _
      $region40: #{down_forward.6} parent=27 // pred_fallthru
        _
      // Predicated region
      $region41: #{down_forward.6} parent=27 // pred_check
        %p772 = pneg %p123
      $region42: #{down_forward.6} parent=27 // pred_check_branch
        %774 = sbr.rel (%p772) target = $region44
      $region43: #{down_forward.6} parent=27 // pred_region
        _
      $region44: #{down_forward.6} parent=27 // pred_fallthru
        _
      // Predicated region
      $region45: #{down_forward.6} parent=27 // pred_check
        %p775 = pneg %p102
      $region46: #{down_forward.6} parent=27 // pred_check_branch
        %777 = sbr.rel (%p775) target = $region48
      $region47: #{down_forward.6} parent=27 // pred_region
        _
      $region48: #{down_forward.6} parent=27 // pred_fallthru
        _
      // Predicated region
      $region49: #{down_forward.6} parent=27 // pred_check
        %p778 = pneg %p123
      $region50: #{down_forward.6} parent=27 // pred_check_branch
        %780 = sbr.rel (%p778) target = $region52
      $region51: #{down_forward.6} parent=27 // pred_region
        _
      $region52: #{down_forward.6} parent=27 // pred_fallthru
        _
    $region28: #{down_forward.6} parent=5 // pred_fallthru
      _
    %p781 = scmp.le.s32.totalorder 2, %s11
    // Predicated region
    $region53: #{down_forward.6} parent=5 // pred_check
      %p782 = pneg %p781
    $region54: #{down_forward.6} parent=5 // pred_check_branch
      %784 = sbr.rel (%p782) target = $region56
    $region55: #{down_forward.6} parent=5 // pred_region
      %s785 = ssub.s32 %s11, 2
      // Predicated region
      $region57: #{down_forward.6} parent=55 // pred_check
        %p786 = pneg %p87
      $region58: #{down_forward.6} parent=55 // pred_check_branch
        %788 = sbr.rel (%p786) target = $region60
      $region59: #{down_forward.6} parent=55 // pred_region
        %s789 = smul.u32 32, %s17
        %p790 = scmp.lt.s32.totalorder %s789, 63
        %s791 = scalar_select %p790, %s789, 63
        %s792 = smul.addr %s791, 8
        %s793 = scalar_lea.vmem %s2, %s792
      $region60: #{down_forward.6} parent=55 // pred_fallthru
        _
    $region56: #{down_forward.6} parent=5 // pred_fallthru
      _
  $region6: #{down_forward.6} parent=0 // loop_footer
    %s15 = sadd.s32 1, %s11
  $region7: #{down_forward.6} parent=0 // loop_footer_branch
    %10 = sbr.rel target = $region3
  $region8: #{down_forward.6} parent=0 // loop_exit
    _

// kernel: down_forward.10
$region0: #{down_forward.10}
  #allocation0 [shape = 'u32[]', space=smem, size = 0x4, offset = 0x4, fixed_abs, tag = 'smem constant byte address 0x4 - core index']
  #allocation1 [shape = 'u32[144,128]{1,0:T(1,128)}', space=vmem, size = 0x12000, scoped, tag = 'internal scratch']
  %s0 = inlined_call_operand.vmem [shape: bf16[128,36], index: 0, kind: input, shape index: {}]
  %s1 = inlined_call_operand.vmem [shape: bf16[36,8], index: 1, kind: input, shape index: {}]
  %s2 = inlined_call_operand.vmem [shape: f32[128,8], index: 2, kind: output, shape index: {0}]
  %s3 = inlined_call_operand.vmem [shape: f32[1,8], index: 3, kind: output, shape index: {1}]
  %s4 = inlined_call_operand.vmem [shape: f32[1,8], index: 4, kind: output, shape index: {2}]
  %5 = xla_tuple %s2, %s3, %s4
  %s6 = sld [smem:[#allocation0]]
  $region38: #{down_forward.10} parent=0
    _
  %s8 = ssub.s32 1, %s6
  %s9 = scalar_select 0, %s8, %s6
  // Predicated region
  $region2: #{down_forward.10} parent=0 // pred_check
    _
  $region3: #{down_forward.10} parent=0 // pred_check_branch
    %11 = sbr.rel (0) target = $region5
  $region4: #{down_forward.10} parent=0 // pred_region
    _
  $region5: #{down_forward.10} parent=0 // pred_fallthru
    _
  // Predicated region
  $region6: #{down_forward.10} parent=0 // pred_check
    _
  $region7: #{down_forward.10} parent=0 // pred_check_branch
    %13 = sbr.rel (0) target = $region9
  $region8: #{down_forward.10} parent=0 // pred_region
    _
  $region9: #{down_forward.10} parent=0 // pred_fallthru
    _
  %p15 = scmp.eq.s32.totalorder 0, 0
  // Predicated region
  $region10: #{down_forward.10} parent=0 // pred_check
    %p16 = pneg %p15
  $region11: #{down_forward.10} parent=0 // pred_check_branch
    %18 = sbr.rel (%p16) target = $region13
  $region12: #{down_forward.10} parent=0 // pred_region
    %vm19 = vcmask 57344
    %20 = vst.msk [vmem:[%s3] sm:$0x1] %vm19, 0.0
    %21 = vst.msk [vmem:[%s4] sm:$0x1] %vm19, 0.0
  $region13: #{down_forward.10} parent=0 // pred_fallthru
    _
  %v22 = vld [vmem:[%s0] sm:$0xf]
  %v23 = vld [vmem:[%s0 + $0x4] sm:$0xf]
  %v24 = vld [vmem:[%s0 + $0x8] sm:$0xf]
  %v25 = vld [vmem:[%s0 + $0xc] sm:$0xf]
  %v26 = vld [vmem:[%s0 + $0x10] sm:$0xf]
  %v27 = vld [vmem:[%s0 + $0x14] sm:$0xf]
  %v28 = vld [vmem:[%s0 + $0x18] sm:$0xf]
  %v29 = vld [vmem:[%s0 + $0x1c] sm:$0xf]
  %v30 = vld [vmem:[%s0 + $0x20] sm:$0xf]
  %v31 = vld [vmem:[%s0 + $0x24] sm:$0xf]
  %v32 = vld [vmem:[%s0 + $0x28] sm:$0xf]
  %v33 = vld [vmem:[%s0 + $0x2c] sm:$0xf]
  %v34 = vld [vmem:[%s0 + $0x30] sm:$0xf]
  %v35 = vld [vmem:[%s0 + $0x34] sm:$0xf]
  %v36 = vld [vmem:[%s0 + $0x38] sm:$0xf]
  %v37 = vld [vmem:[%s0 + $0x3c] sm:$0xf]
  %v38 = vld [vmem:[%s1] sm:$0xf]
  %v39 = vld [vmem:[%s1 + $0x4] sm:$0xf]
  %v40 = vld [vmem:[%s1 + $0x8] sm:$0xf]
  %v41 = vld [vmem:[%s1 + $0xc] sm:$0xf]
  %v42 = vld [vmem:[%s1 + $0x10] sm:$0x3]
  %v59 = vunpack.c.l.b16 %v22
  %v60 = vunpack.c.l.b16 %v23
  %v61 = vunpack.c.l.b16 %v24
  %v62 = vunpack.c.l.b16 %v25
  %v63 = vunpack.c.l.b16 %v26
  %v64 = vunpack.c.l.b16 %v27
  %v65 = vunpack.c.l.b16 %v28
  %v66 = vunpack.c.l.b16 %v29
  %v67 = vunpack.c.l.b16 %v30
  %v68 = vunpack.c.l.b16 %v31
  %v69 = vunpack.c.l.b16 %v32
  %v70 = vunpack.c.l.b16 %v33
  %v71 = vunpack.c.l.b16 %v34
  %v72 = vunpack.c.l.b16 %v35
  %v73 = vunpack.c.l.b16 %v36
  %v74 = vunpack.c.l.b16 %v37
  %v75 = vpack.c.b16 %v60, %v59
  %v76 = vpack.c.b16 %v62, %v61
  %v77 = vpack.c.b16 %v64, %v63
  %v78 = vpack.c.b16 %v66, %v65
  %v79 = vpack.c.b16 %v68, %v67
  %v80 = vpack.c.b16 %v70, %v69
  %v81 = vpack.c.b16 %v72, %v71
  %v82 = vpack.c.b16 %v74, %v73
  %v88 = vunpack.c.l.b16 %v38
  %v89 = vunpack.c.l.b16 %v39
  %v90 = vunpack.c.l.b16 %v40
  %v91 = vunpack.c.l.b16 %v41
  %v92 = vunpack.c.l.b16 %v42
  %v93 = vpack.c.b16 %v89, %v88
  %v94 = vpack.c.b16 %v91, %v90
  %v95 = vpack.c.b16 %v92, %v92
  %vm98 = vcmask 293888
  %v100 = vsel %vm98, %v75, 0
  %v103 = vsel %vm98, %v76, 0
  %v106 = vsel %vm98, %v77, 0
  %v109 = vsel %vm98, %v78, 0
  %v112 = vsel %vm98, %v79, 0
  %v115 = vsel %vm98, %v80, 0
  %v118 = vsel %vm98, %v81, 0
  %v121 = vsel %vm98, %v82, 0
  %vm123 = vcmask 1041408
  %v125 = vsel %vm123, %v95, 0
  %127 = vmatprep.subr.bf16.mxu0 0
  %128 = vmatpush1.bf16.msra.mxu0 %v93
  %129 = vmatprep.subr.bf16.mxu0 0
  %130 = vmatpush1.bf16.msra.mxu0 %v94
  %131 = vmatprep.subr.bf16.mxu0 0
  %132 = vmatpush1.bf16.msra.mxu0 %v125
  %133 = vmatprep.subr.bf16.mxu0 0
  %134 = vmatpush1.bf16.msra.mxu0 0
  %135 = vmatprep.subr.bf16.mxu0 0
  %136 = vmatpush1.bf16.msra.mxu0 0
  %137 = vmatprep.subr.bf16.mxu0 0
  %138 = vmatpush1.bf16.msra.mxu0 0
  %139 = vmatprep.subr.bf16.mxu0 0
  %140 = vmatpush1.bf16.msra.mxu0 0
  %141 = vmatprep.subr.bf16.mxu0 0
  %142 = vmatpush1.bf16.msra.mxu0 0
  %143 = vmatprep.subr.bf16.mxu0 0
  %144 = vmatpush1.bf16.msra.mxu0 0
  %145 = vmatprep.subr.bf16.mxu0 0
  %146 = vmatpush1.bf16.msra.mxu0 0
  %147 = vmatprep.subr.bf16.mxu0 0
  %148 = vmatpush1.bf16.msra.mxu0 0
  %149 = vmatprep.subr.bf16.mxu0 0
  %150 = vmatpush1.bf16.msra.mxu0 0
  %151 = vmatprep.subr.bf16.mxu0 0
  %152 = vmatpush1.bf16.msra.mxu0 0
  %153 = vmatprep.subr.bf16.mxu0 0
  %154 = vmatpush1.bf16.msra.mxu0 0
  %155 = vmatprep.subr.bf16.mxu0 0
  %156 = vmatpush1.bf16.msra.mxu0 0
  %157 = vmatprep.subr.bf16.mxu0 0
  %158 = vmatpush1.bf16.msra.mxu0 0
  %159 = vmatprep.mubr.bf16.mxu0 0
  %160 = vmatmul.mubr.bf16.gmra.mrb[0].mxu0 %v100
  %v161 = vpop.f32.mrb[0].mxu0
  %v162 = vadd.f32 0.0, %v161
  %v163 = vpop.f32.mrb[0].mxu0
  %v164 = vpop.f32.mrb[0].mxu0
  %v165 = vadd.f32 0.0, %v164
  %v166 = vpop.f32.mrb[0].mxu0
  %167 = vmatprep.mubr.bf16.mxu0 0
  %168 = vmatmul.mubr.bf16.gmra.mrb[0].mxu0 %v103
  %v169 = vpop.f32.mrb[0].mxu0
  %v170 = vadd.f32 0.0, %v169
  %v171 = vpop.f32.mrb[0].mxu0
  %v172 = vpop.f32.mrb[0].mxu0
  %v173 = vadd.f32 0.0, %v172
  %v174 = vpop.f32.mrb[0].mxu0
  %175 = vmatprep.mubr.bf16.mxu0 0
  %176 = vmatmul.mubr.bf16.gmra.mrb[0].mxu0 %v106
  %v177 = vpop.f32.mrb[0].mxu0
  %v178 = vadd.f32 0.0, %v177
  %v179 = vpop.f32.mrb[0].mxu0
  %v180 = vpop.f32.mrb[0].mxu0
  %v181 = vadd.f32 0.0, %v180
  %v182 = vpop.f32.mrb[0].mxu0
  %183 = vmatprep.mubr.bf16.mxu0 0
  %184 = vmatmul.mubr.bf16.gmra.mrb[0].mxu0 %v109
  %v185 = vpop.f32.mrb[0].mxu0
  %v186 = vadd.f32 0.0, %v185
  %v187 = vpop.f32.mrb[0].mxu0
  %v188 = vpop.f32.mrb[0].mxu0
  %v189 = vadd.f32 0.0, %v188
  %v190 = vpop.f32.mrb[0].mxu0
  %191 = vmatprep.mubr.bf16.mxu0 0
  %192 = vmatmul.mubr.bf16.gmra.mrb[0].mxu0 %v112
  %v193 = vpop.f32.mrb[0].mxu0
  %v194 = vadd.f32 0.0, %v193
  %v195 = vpop.f32.mrb[0].mxu0
  %v196 = vpop.f32.mrb[0].mxu0
  %v197 = vadd.f32 0.0, %v196
  %v198 = vpop.f32.mrb[0].mxu0
  %199 = vmatprep.mubr.bf16.mxu0 0
  %200 = vmatmul.mubr.bf16.gmra.mrb[0].mxu0 %v115
  %v201 = vpop.f32.mrb[0].mxu0
  %v202 = vadd.f32 0.0, %v201
  %v203 = vpop.f32.mrb[0].mxu0
  %v204 = vpop.f32.mrb[0].mxu0
  %v205 = vadd.f32 0.0, %v204
  %v206 = vpop.f32.mrb[0].mxu0
  %207 = vmatprep.mubr.bf16.mxu0 0
  %208 = vmatmul.mubr.bf16.gmra.mrb[0].mxu0 %v118
  %v209 = vpop.f32.mrb[0].mxu0
  %v210 = vadd.f32 0.0, %v209
  %v211 = vpop.f32.mrb[0].mxu0
  %v212 = vpop.f32.mrb[0].mxu0
  %v213 = vadd.f32 0.0, %v212
  %v214 = vpop.f32.mrb[0].mxu0
  %215 = vmatprep.mubr.bf16.mxu0 0
  %216 = vmatmul.mubr.bf16.gmra.mrb[0].mxu0 %v121
  %v217 = vpop.f32.mrb[0].mxu0
  %v218 = vadd.f32 0.0, %v217
  %v219 = vpop.f32.mrb[0].mxu0
  %v220 = vpop.f32.mrb[0].mxu0
  %v221 = vadd.f32 0.0, %v220
  %v222 = vpop.f32.mrb[0].mxu0
  %223 = vdwg.mxu0
  %vm224 = vcmask 64512
  %225 = vst.msk [vmem:[%s2] sm:$0xff] %vm224, %v162
  %226 = vst.msk [vmem:[%s2 + $0x8] sm:$0xff] %vm224, %v165
  %227 = vst.msk [vmem:[%s2 + $0x10] sm:$0xff] %vm224, %v170
  %228 = vst.msk [vmem:[%s2 + $0x18] sm:$0xff] %vm224, %v173
  %229 = vst.msk [vmem:[%s2 + $0x20] sm:$0xff] %vm224, %v178
  %230 = vst.msk [vmem:[%s2 + $0x28] sm:$0xff] %vm224, %v181
  %231 = vst.msk [vmem:[%s2 + $0x30] sm:$0xff] %vm224, %v186
  %232 = vst.msk [vmem:[%s2 + $0x38] sm:$0xff] %vm224, %v189
  %233 = vst.msk [vmem:[%s2 + $0x40] sm:$0xff] %vm224, %v194
  %234 = vst.msk [vmem:[%s2 + $0x48] sm:$0xff] %vm224, %v197
  %235 = vst.msk [vmem:[%s2 + $0x50] sm:$0xff] %vm224, %v202
  %236 = vst.msk [vmem:[%s2 + $0x58] sm:$0xff] %vm224, %v205
  %237 = vst.msk [vmem:[%s2 + $0x60] sm:$0xff] %vm224, %v210
  %238 = vst.msk [vmem:[%s2 + $0x68] sm:$0xff] %vm224, %v213
  %239 = vst.msk [vmem:[%s2 + $0x70] sm:$0xff] %vm224, %v218
  %240 = vst.msk [vmem:[%s2 + $0x78] sm:$0xff] %vm224, %v221
  %v241 = vld [vmem:[%s3] sm:$0x1]
  %v242 = vsel %vm224, %v162, 0.0
  %v243 = vsel %vm224, %v165, 0.0
  %v244 = vadd.f32 %v242, %v243
  %v245 = vsel %vm224, %v170, 0.0
  %v246 = vadd.f32 %v244, %v245
  %v247 = vsel %vm224, %v173, 0.0
  %v248 = vadd.f32 %v246, %v247
  %v249 = vsel %vm224, %v178, 0.0
  %v250 = vadd.f32 %v248, %v249
  %v251 = vsel %vm224, %v181, 0.0
  %v252 = vadd.f32 %v250, %v251
  %v253 = vsel %vm224, %v186, 0.0
  %v254 = vadd.f32 %v252, %v253
  %v255 = vsel %vm224, %v189, 0.0
  %v256 = vadd.f32 %v254, %v255
  %v257 = vsel %vm224, %v194, 0.0
  %v258 = vadd.f32 %v256, %v257
  %v259 = vsel %vm224, %v197, 0.0
  %v260 = vadd.f32 %v258, %v259
  %v261 = vsel %vm224, %v202, 0.0
  %v262 = vadd.f32 %v260, %v261
  %v263 = vsel %vm224, %v205, 0.0
  %v264 = vadd.f32 %v262, %v263
  %v265 = vsel %vm224, %v210, 0.0
  %v266 = vadd.f32 %v264, %v265
  %v267 = vsel %vm224, %v213, 0.0
  %v268 = vadd.f32 %v266, %v267
  %v269 = vsel %vm224, %v218, 0.0
  %v270 = vadd.f32 %v268, %v269
  %v271 = vsel %vm224, %v221, 0.0
  %v272 = vadd.f32 %v270, %v271
  %v273 = vrot.slane %v272, 4
  %v274 = vadd.f32 %v272, %v273
  %v275 = vrot.slane %v274, 2
  %v276 = vadd.f32 %v274, %v275
  %v277 = vrot.slane %v276, 1
  %v278 = vadd.f32 %v276, %v277
  %v279 = vadd.f32 %v241, %v278
  %vm280 = vcmask 57344
  %281 = vst.msk [vmem:[%s3] sm:$0x1] %vm280, %v279
  %v282 = vld [vmem:[%s4] sm:$0x1]
  %v283 = vmul.f32 %v162, %v162
  %v284 = vmul.f32 %v165, %v165
  %v285 = vmul.f32 %v170, %v170
  %v286 = vmul.f32 %v173, %v173
  %v287 = vmul.f32 %v178, %v178
  %v288 = vmul.f32 %v181, %v181
  %v289 = vmul.f32 %v186, %v186
  %v290 = vmul.f32 %v189, %v189
  %v291 = vmul.f32 %v194, %v194
  %v292 = vmul.f32 %v197, %v197
  %v293 = vmul.f32 %v202, %v202
  %v294 = vmul.f32 %v205, %v205
  %v295 = vmul.f32 %v210, %v210
  %v296 = vmul.f32 %v213, %v213
  %v297 = vmul.f32 %v218, %v218
  %v298 = vmul.f32 %v221, %v221
  %v299 = vsel %vm224, %v283, 0.0
  %v300 = vsel %vm224, %v284, 0.0
  %v301 = vadd.f32 %v299, %v300
  %v302 = vsel %vm224, %v285, 0.0
  %v303 = vadd.f32 %v301, %v302
  %v304 = vsel %vm224, %v286, 0.0
  %v305 = vadd.f32 %v303, %v304
  %v306 = vsel %vm224, %v287, 0.0
  %v307 = vadd.f32 %v305, %v306
  %v308 = vsel %vm224, %v288, 0.0
  %v309 = vadd.f32 %v307, %v308
  %v310 = vsel %vm224, %v289, 0.0
  %v311 = vadd.f32 %v309, %v310
  %v312 = vsel %vm224, %v290, 0.0
  %v313 = vadd.f32 %v311, %v312
  %v314 = vsel %vm224, %v291, 0.0
  %v315 = vadd.f32 %v313, %v314
  %v316 = vsel %vm224, %v292, 0.0
  %v317 = vadd.f32 %v315, %v316
  %v318 = vsel %vm224, %v293, 0.0
  %v319 = vadd.f32 %v317, %v318
  %v320 = vsel %vm224, %v294, 0.0
  %v321 = vadd.f32 %v319, %v320
  %v322 = vsel %vm224, %v295, 0.0
  %v323 = vadd.f32 %v321, %v322
  %v324 = vsel %vm224, %v296, 0.0
  %v325 = vadd.f32 %v323, %v324
  %v326 = vsel %vm224, %v297, 0.0
  %v327 = vadd.f32 %v325, %v326
  %v328 = vsel %vm224, %v298, 0.0
  %v329 = vadd.f32 %v327, %v328
  %v330 = vrot.slane %v329, 4
  %v331 = vadd.f32 %v329, %v330
  %v332 = vrot.slane %v331, 2
  %v333 = vadd.f32 %v331, %v332
  %v334 = vrot.slane %v333, 1
  %v335 = vadd.f32 %v333, %v334
  %v336 = vadd.f32 %v282, %v335
  %337 = vst.msk [vmem:[%s4] sm:$0x1] %vm280, %v336
  // Predicated region
  $region14: #{down_forward.10} parent=0 // pred_check
    _
  $region15: #{down_forward.10} parent=0 // pred_check_branch
    %339 = sbr.rel (0) target = $region17
  $region16: #{down_forward.10} parent=0 // pred_region
    _
  $region17: #{down_forward.10} parent=0 // pred_fallthru
    _
  // Predicated region
  $region18: #{down_forward.10} parent=0 // pred_check
    _
  $region19: #{down_forward.10} parent=0 // pred_check_branch
    %341 = sbr.rel (0) target = $region21
  $region20: #{down_forward.10} parent=0 // pred_region
    _
  $region21: #{down_forward.10} parent=0 // pred_fallthru
    _
  // Predicated region
  $region22: #{down_forward.10} parent=0 // pred_check
    _
  $region23: #{down_forward.10} parent=0 // pred_check_branch
    %343 = sbr.rel (0) target = $region25
  $region24: #{down_forward.10} parent=0 // pred_region
    _
  $region25: #{down_forward.10} parent=0 // pred_fallthru
    _
  // Predicated region
  $region26: #{down_forward.10} parent=0 // pred_check
    _
  $region27: #{down_forward.10} parent=0 // pred_check_branch
    %345 = sbr.rel (0) target = $region29
  $region28: #{down_forward.10} parent=0 // pred_region
    _
  $region29: #{down_forward.10} parent=0 // pred_fallthru
    _
  // Predicated region
  $region30: #{down_forward.10} parent=0 // pred_check
    _
  $region31: #{down_forward.10} parent=0 // pred_check_branch
    %347 = sbr.rel (0) target = $region33
  $region32: #{down_forward.10} parent=0 // pred_region
    _
  $region33: #{down_forward.10} parent=0 // pred_fallthru
    _
  // Predicated region
  $region34: #{down_forward.10} parent=0 // pred_check
    _
  $region35: #{down_forward.10} parent=0 // pred_check_branch
    %349 = sbr.rel (0) target = $region37
  $region36: #{down_forward.10} parent=0 // pred_region
    _
  $region37: #{down_forward.10} parent=0 // pred_fallthru
    _

// kernel: down_forward.11
$region0: #{down_forward.11}
  #allocation0 [shape = 'u32[]', space=smem, size = 0x4, offset = 0x4, fixed_abs, tag = 'smem constant byte address 0x4 - core index']
  #allocation1 [shape = 'u32[144,128]{1,0:T(1,128)}', space=vmem, size = 0x12000, scoped, tag = 'internal scratch']
  %s0 = inlined_call_operand.vmem [shape: f32[8,128], index: 0, kind: input, shape index: {}]
  %s1 = inlined_call_operand.vmem [shape: f32[1,128], index: 1, kind: input, shape index: {}]
  %s2 = inlined_call_operand.vmem [shape: f32[1,128], index: 2, kind: input, shape index: {}]
  %s3 = inlined_call_operand.vmem [shape: f32[8,128], index: 3, kind: output, shape index: {}]
  %s4 = sld [smem:[#allocation0]]
  $region22: #{down_forward.11} parent=0
    _
  %s6 = ssub.s32 1, %s4
  %s7 = scalar_select 0, %s6, %s4
  // Predicated region
  $region2: #{down_forward.11} parent=0 // pred_check
    _
  $region3: #{down_forward.11} parent=0 // pred_check_branch
    %9 = sbr.rel (0) target = $region5
  $region4: #{down_forward.11} parent=0 // pred_region
    _
  $region5: #{down_forward.11} parent=0 // pred_fallthru
    _
  // Predicated region
  $region6: #{down_forward.11} parent=0 // pred_check
    _
  $region7: #{down_forward.11} parent=0 // pred_check_branch
    %11 = sbr.rel (0) target = $region9
  $region8: #{down_forward.11} parent=0 // pred_region
    _
  $region9: #{down_forward.11} parent=0 // pred_fallthru
    _
  // Predicated region
  $region10: #{down_forward.11} parent=0 // pred_check
    _
  $region11: #{down_forward.11} parent=0 // pred_check_branch
    %13 = sbr.rel (0) target = $region13
  $region12: #{down_forward.11} parent=0 // pred_region
    _
  $region13: #{down_forward.11} parent=0 // pred_fallthru
    _
  %v14 = vld [vmem:[%s0] sm:$0xff]
  %v15 = vld [vmem:[%s1] sm:$0x1]
  %v17 = vlaneseq
  %v18 = vshrl.u32 %v17, 7
  %v19 = vsub.s32 0, %v18
  %v20 = vrot.slane %v15, %v19
  %v22 = vmul.f32 %v14, %v20
  %v23 = vld [vmem:[%s2] sm:$0x1]
  %v25 = vlaneseq
  %v26 = vshrl.u32 %v25, 7
  %v27 = vsub.s32 0, %v26
  %v28 = vrot.slane %v23, %v27
  %v30 = vadd.f32 %v22, %v28
  %vm31 = vcmp.ge.f32.partialorder %v30, 0.0
  %v32 = vmul.f32 %v30, 0.2
  %v33 = vsel %vm31, %v30, %v32
  %34 = vst [vmem:[%s3] sm:$0xff] %v33
  // Predicated region
  $region14: #{down_forward.11} parent=0 // pred_check
    _
  $region15: #{down_forward.11} parent=0 // pred_check_branch
    %36 = sbr.rel (0) target = $region17
  $region16: #{down_forward.11} parent=0 // pred_region
    _
  $region17: #{down_forward.11} parent=0 // pred_fallthru
    _
  // Predicated region
  $region18: #{down_forward.11} parent=0 // pred_check
    _
  $region19: #{down_forward.11} parent=0 // pred_check_branch
    %38 = sbr.rel (0) target = $region21
  $region20: #{down_forward.11} parent=0 // pred_region
    _
  $region21: #{down_forward.11} parent=0 // pred_fallthru
    _

</llo_original>
